<compile_context>
chip_gen: v7x
topology: tpu7x:2x2x1
jax: 0.10.0
libtpu: 0.0.40
codegen_flags: <defaults>
</compile_context>

<pallas_src>
import math
from functools import partial

import jax
import jax.numpy as jnp
from jax.experimental import pallas as pl
from jax.experimental.pallas import tpu as pltpu


def mha_kernel(x_ref, wi_ref, bi_ref, wo_ref, bo_ref, o_ref, *, num_heads):
    """Self-attention on `bb` batch elements, entirely in feature-major layout.

    x_ref  : (bb, D, T)   input, channels-major (exactly the module's layout)
    wi_ref : (3D, D)      packed q/k/v in-projection weight, q rows pre-scaled
    bi_ref : (3D, 1)      packed q/k/v in-projection bias, q part pre-scaled
    wo_ref : (D, D)       output projection weight
    bo_ref : (D, 1)       output projection bias
    o_ref  : (bb, D, T)   output, channels-major
    """
    bb, D, T = x_ref.shape
    H = num_heads
    hd = D // H
    f32 = jnp.float32

    x = x_ref[...]                                                     # (bb, D, T)

    # Fused QKV projection, feature-major: qkv^T[b] = W_in @ x[b] + b_in.
    # One batched MXU matmul over the folded batch, one broadcast bias add.
    wi_b = jnp.broadcast_to(wi_ref[...], (bb, 3 * D, D))
    qkvT = jnp.einsum("bfd,bdt->bft", wi_b, x,
                      preferred_element_type=f32) + bi_ref[...]        # (bb, 3D, T)

    # q/k/v split = sublane-tile-aligned row slices (free vreg selects);
    # head split = leading-dim reshape (layout-preserving for hd % 8 == 0).
    qT = qkvT[:, 0 * D:1 * D, :].reshape(bb * H, hd, T)                # (G, hd, T)
    kT = qkvT[:, 1 * D:2 * D, :].reshape(bb * H, hd, T)
    vT = qkvT[:, 2 * D:3 * D, :].reshape(bb * H, hd, T)

    # Scores for all (batch, head) pairs with one head-batched einsum; only q
    # needs a cheap (hd, T) minor-dims XLU transpose to reach canonical
    # batched-matmul form.  The 1/sqrt(hd) scale is already folded into W_q.
    q = jnp.transpose(qT, (0, 2, 1))                                   # (G, T, hd)
    s = jnp.einsum("gqd,gdk->gqk", q, kT,
                   preferred_element_type=f32)                         # (G, T, T)

    # Numerically-stable softmax over keys; approximate reciprocal runs on the
    # EUP slot instead of a VALU divide.
    s = s - jnp.max(s, axis=-1, keepdims=True)
    p = jnp.exp(s)
    p = p * pl.reciprocal(jnp.sum(p, axis=-1, keepdims=True), approx=True)

    # P @ V contracted over keys, producing the per-head output already in
    # feature-major (G, hd, T) layout; concatenating heads is then a free
    # leading-dim reshape back to (bb, D, T).
    attnT = jnp.einsum("gdk,gqk->gdq", vT, p,
                       preferred_element_type=f32).reshape(bb, D, T)

    # Output projection stays feature-major, so the result is written in the
    # module's (B, d_model, T) layout directly (no output transpose either).
    wo_b = jnp.broadcast_to(wo_ref[...], (bb, D, D))
    outT = jnp.einsum("bed,bdt->bet", wo_b, attnT,
                      preferred_element_type=f32) + bo_ref[...]        # (bb, D, T)
    o_ref[...] = outT.astype(o_ref.dtype)


@partial(jax.jit, static_argnames=("num_heads",))
def attention_forward(x_nct, in_proj_w, in_proj_b, out_proj_w, out_proj_b, *, num_heads):
    """Replicates Attention.forward(x) with x of shape (B, d_model, T)."""
    B, D, T = x_nct.shape
    assert D % num_heads == 0, "d_model must be divisible by num_heads"
    hd = D // num_heads
    scale = 1.0 / math.sqrt(hd)

    x = x_nct.astype(jnp.float32)

    # Fold the 1/sqrt(hd) scale into the q third of the in-projection
    # (weight + bias) — free constant folding in XLA, removes one VPU multiply
    # from the kernel body.
    wi = in_proj_w.astype(jnp.float32)
    wi = jnp.concatenate([wi[:D] * scale, wi[D:]], axis=0)             # (3D, D)
    bi = in_proj_b.astype(jnp.float32)
    bi = jnp.concatenate([bi[:D] * scale, bi[D:]]).reshape(3 * D, 1)   # (3D, 1)
    wo = out_proj_w.astype(jnp.float32)                                # (D, D)
    bo = out_proj_b.astype(jnp.float32).reshape(D, 1)                  # (D, 1)

    # Batch handling: at tiny per-element work the kernel is dispatch /
    # prologue bound, so fold the whole batch into a single grid step on every
    # chip generation.  Only split the batch over grid steps (and thus over
    # TensorCores via "parallel") once each element is worth a few µs of MXU
    # time — e.g. the long-T flash-tiled path.
    per_elem_flops = 2 * T * D * 3 * D + 4 * num_heads * T * T * hd + 2 * T * D * D
    fold_batch = (per_elem_flops < 4_000_000) or (B == 1)
    bb = B if fold_batch else 1
    grid = (B // bb,)

    out = pl.pallas_call(
        partial(mha_kernel, num_heads=num_heads),
        out_shape=jax.ShapeDtypeStruct((B, D, T), jnp.float32),
        grid_spec=pltpu.PrefetchScalarGridSpec(
            num_scalar_prefetch=0,
            grid=grid,
            in_specs=[
                pl.BlockSpec((bb, D, T), lambda b: (b, 0, 0)),       # x (NCT)
                pl.BlockSpec((3 * D, D), lambda b: (0, 0)),          # W_in (q pre-scaled)
                pl.BlockSpec((3 * D, 1), lambda b: (0, 0)),          # b_in
                pl.BlockSpec((D, D), lambda b: (0, 0)),              # W_out
                pl.BlockSpec((D, 1), lambda b: (0, 0)),              # b_out
            ],
            out_specs=pl.BlockSpec((bb, D, T), lambda b: (b, 0, 0)),
        ),
        compiler_params=pltpu.CompilerParams(dimension_semantics=("parallel",)),
    )(x, wi, bi, wo, bo)

    return out                                                         # (B, d_model, T)


def attention_reference(x_nct, in_proj_w, in_proj_b, out_proj_w, out_proj_b, num_heads):
    """Pure-JAX reference replicating torch.nn.MultiheadAttention forward."""
    B, D, T = x_nct.shape
    hd = D // num_heads
    x = jnp.transpose(x_nct, (0, 2, 1)).astype(jnp.float32)           # (B, T, D)
    qkv = jnp.einsum("btd,ed->bte", x, in_proj_w) + in_proj_b
    q, k, v = jnp.split(qkv, 3, axis=-1)

    def heads(a):
        return a.reshape(B, T, num_heads, hd).transpose(0, 2, 1, 3)

    q, k, v = heads(q), heads(k), heads(v)
    s = jnp.einsum("bhqd,bhkd->bhqk", q, k) / math.sqrt(hd)
    p = jax.nn.softmax(s, axis=-1)
    o = jnp.einsum("bhqk,bhkd->bhqd", p, v)
    o = o.transpose(0, 2, 1, 3).reshape(B, T, D)
    o = jnp.einsum("btd,ed->bte", o, out_proj_w) + out_proj_b
    return jnp.transpose(o, (0, 2, 1))


if __name__ == "__main__":
    d_model = 32
    num_heads = 4          # the module's `d_head` arg is nn.MultiheadAttention's num_heads
    B, T = 2, 8

    key = jax.random.PRNGKey(0)
    k_x, k_wi, k_bi, k_wo, k_bo = jax.random.split(key, 5)

    # Deterministic synthetic parameters (shapes match nn.MultiheadAttention).
    x = jax.random.normal(k_x, (B, d_model, T), dtype=jnp.float32)
    in_proj_w = jax.random.normal(k_wi, (3 * d_model, d_model), jnp.float32) * (1.0 / math.sqrt(d_model))
    in_proj_b = jax.random.normal(k_bi, (3 * d_model,), jnp.float32) * 0.02
    out_proj_w = jax.random.normal(k_wo, (d_model, d_model), jnp.float32) * (1.0 / math.sqrt(d_model))
    out_proj_b = jax.random.normal(k_bo, (d_model,), jnp.float32) * 0.02

    out = attention_forward(x, in_proj_w, in_proj_b, out_proj_w, out_proj_b,
                            num_heads=num_heads)
    out = jax.block_until_ready(out)

    ref = attention_reference(x, in_proj_w, in_proj_b, out_proj_w, out_proj_b, num_heads)
    assert out.shape == (B, d_model, T)
    # Tolerance loosened slightly vs exact math because the kernel uses the
    # EUP approximate reciprocal for the softmax normalization.
    assert jnp.allclose(out, ref, atol=5e-3, rtol=5e-3), "mismatch vs reference"

    print("KERNEL_OK")
</pallas_src>

<mosaic_0001>
module attributes {stable_mosaic.version = 11 : i64} {
  func.func @mha_kernel(%arg0: i32, %arg1: memref<2x32x8xf32, #tpu.memory_space<vmem>>, %arg2: memref<96x32xf32, #tpu.memory_space<vmem>>, %arg3: memref<96x1xf32, #tpu.memory_space<vmem>>, %arg4: memref<32x32xf32, #tpu.memory_space<vmem>>, %arg5: memref<32x1xf32, #tpu.memory_space<vmem>>, %arg6: memref<2x32x8xf32, #tpu.memory_space<vmem>>) attributes {dimension_semantics = [#tpu.dimension_semantics<parallel>], iteration_bounds = array<i64: 1>, scalar_prefetch = 0 : i64, scratch_operands = 0 : i64, tpu.core_type = #tpu.core_type<tc>, window_params = [{transform_indices = @transform_0, window_bounds = array<i64: 2, 32, 8>}, {pipeline_mode = #tpu.pipeline_mode<synchronous>, transform_indices = @transform_1, window_bounds = array<i64: 96, 32>}, {pipeline_mode = #tpu.pipeline_mode<synchronous>, transform_indices = @transform_2, window_bounds = array<i64: 96, 1>}, {pipeline_mode = #tpu.pipeline_mode<synchronous>, transform_indices = @transform_3, window_bounds = array<i64: 32, 32>}, {pipeline_mode = #tpu.pipeline_mode<synchronous>, transform_indices = @transform_4, window_bounds = array<i64: 32, 1>}, {transform_indices = @transform_5, window_bounds = array<i64: 2, 32, 8>}]} {
    %c0 = arith.constant 0 : index
    %c0_0 = arith.constant 0 : index
    %c0_1 = arith.constant 0 : index
    %0 = vector.load %arg1[%c0, %c0_0, %c0_1] : memref<2x32x8xf32, #tpu.memory_space<vmem>>, vector<2x32x8xf32>
    %c0_2 = arith.constant 0 : index
    %c0_3 = arith.constant 0 : index
    %1 = vector.load %arg2[%c0_2, %c0_3] : memref<96x32xf32, #tpu.memory_space<vmem>>, vector<96x32xf32>
    %2 = vector.shape_cast %1 : vector<96x32xf32> to vector<1x96x32xf32>
    %3 = vector.broadcast %2 : vector<1x96x32xf32> to vector<2x96x32xf32>
    "tpu.trace_start"() <{level = 10 : i32, message = "bfd,bdt->bft"}> : () -> ()
    %cst = arith.constant dense<0.000000e+00> : vector<2x96x8xf32>
    %4 = tpu.matmul %3, %0, %cst {dimension_numbers = #tpu.dot_dimension_numbers<[2], [1], [1], [2], [0, 0, 0, 1, 1, 2], [0], [0]>} : vector<2x96x32xf32>, vector<2x32x8xf32>, vector<2x96x8xf32> -> vector<2x96x8xf32>
    "tpu.trace_stop"() : () -> ()
    %c0_4 = arith.constant 0 : index
    %c0_5 = arith.constant 0 : index
    %5 = vector.load %arg3[%c0_4, %c0_5] : memref<96x1xf32, #tpu.memory_space<vmem>>, vector<96x1xf32>
    %6 = vector.shape_cast %5 : vector<96x1xf32> to vector<1x96x1xf32>
    %7 = vector.broadcast %6 : vector<1x96x1xf32> to vector<2x96x8xf32>
    %8 = arith.addf %4, %7 : vector<2x96x8xf32>
    %9 = vector.extract_strided_slice %8 {offsets = [0, 0, 0], sizes = [2, 32, 8], strides = [1, 1, 1]} : vector<2x96x8xf32> to vector<2x32x8xf32>
    %10 = vector.shape_cast %9 : vector<2x32x8xf32> to vector<8x8x8xf32>
    %11 = vector.extract_strided_slice %8 {offsets = [0, 32, 0], sizes = [2, 32, 8], strides = [1, 1, 1]} : vector<2x96x8xf32> to vector<2x32x8xf32>
    %12 = vector.shape_cast %11 : vector<2x32x8xf32> to vector<8x8x8xf32>
    %13 = vector.extract_strided_slice %8 {offsets = [0, 64, 0], sizes = [2, 32, 8], strides = [1, 1, 1]} : vector<2x96x8xf32> to vector<2x32x8xf32>
    %14 = vector.shape_cast %13 : vector<2x32x8xf32> to vector<8x8x8xf32>
    %15 = tpu.transpose %10, [0, 2, 1] : vector<8x8x8xf32> -> vector<8x8x8xf32>
    "tpu.trace_start"() <{level = 10 : i32, message = "gqd,gdk->gqk"}> : () -> ()
    %cst_6 = arith.constant dense<0.000000e+00> : vector<8x8x8xf32>
    %16 = tpu.matmul %15, %12, %cst_6 {dimension_numbers = #tpu.dot_dimension_numbers<[2], [1], [1], [2], [0, 0, 0, 1, 1, 2], [0], [0]>} : vector<8x8x8xf32>, vector<8x8x8xf32>, vector<8x8x8xf32> -> vector<8x8x8xf32>
    "tpu.trace_stop"() : () -> ()
    %cst_7 = arith.constant dense<0xFF800000> : vector<8x8xf32>
    %17 = vector.multi_reduction <maximumf>, %16, %cst_7 [2] : vector<8x8x8xf32> to vector<8x8xf32>
    %18 = vector.shape_cast %17 : vector<8x8xf32> to vector<8x8x1xf32>
    %19 = vector.broadcast %18 : vector<8x8x1xf32> to vector<8x8x8xf32>
    %20 = arith.subf %16, %19 : vector<8x8x8xf32>
    %21 = math.exp %20 : vector<8x8x8xf32>
    %cst_8 = arith.constant dense<0.000000e+00> : vector<8x8xf32>
    %22 = vector.multi_reduction <add>, %21, %cst_8 [2] : vector<8x8x8xf32> to vector<8x8xf32>
    %23 = vector.shape_cast %22 : vector<8x8xf32> to vector<8x8x1xf32>
    %24 = tpu.reciprocal %23 {approx = true} : vector<8x8x1xf32> -> vector<8x8x1xf32>
    %25 = vector.broadcast %24 : vector<8x8x1xf32> to vector<8x8x8xf32>
    %26 = arith.mulf %21, %25 : vector<8x8x8xf32>
    "tpu.trace_start"() <{level = 10 : i32, message = "gdk,gqk->gdq"}> : () -> ()
    %cst_9 = arith.constant dense<0.000000e+00> : vector<8x8x8xf32>
    %27 = tpu.matmul %14, %26, %cst_9 {dimension_numbers = #tpu.dot_dimension_numbers<[2], [2], [1], [1], [0, 0, 0, 1, 1, 1], [0], [0]>} : vector<8x8x8xf32>, vector<8x8x8xf32>, vector<8x8x8xf32> -> vector<8x8x8xf32>
    "tpu.trace_stop"() : () -> ()
    %28 = vector.shape_cast %27 : vector<8x8x8xf32> to vector<2x32x8xf32>
    %c0_10 = arith.constant 0 : index
    %c0_11 = arith.constant 0 : index
    %29 = vector.load %arg4[%c0_10, %c0_11] : memref<32x32xf32, #tpu.memory_space<vmem>>, vector<32x32xf32>
    %30 = vector.shape_cast %29 : vector<32x32xf32> to vector<1x32x32xf32>
    %31 = vector.broadcast %30 : vector<1x32x32xf32> to vector<2x32x32xf32>
    "tpu.trace_start"() <{level = 10 : i32, message = "bed,bdt->bet"}> : () -> ()
    %cst_12 = arith.constant dense<0.000000e+00> : vector<2x32x8xf32>
    %32 = tpu.matmul %31, %28, %cst_12 {dimension_numbers = #tpu.dot_dimension_numbers<[2], [1], [1], [2], [0, 0, 0, 1, 1, 2], [0], [0]>} : vector<2x32x32xf32>, vector<2x32x8xf32>, vector<2x32x8xf32> -> vector<2x32x8xf32>
    "tpu.trace_stop"() : () -> ()
    %c0_13 = arith.constant 0 : index
    %c0_14 = arith.constant 0 : index
    %33 = vector.load %arg5[%c0_13, %c0_14] : memref<32x1xf32, #tpu.memory_space<vmem>>, vector<32x1xf32>
    %34 = vector.shape_cast %33 : vector<32x1xf32> to vector<1x32x1xf32>
    %35 = vector.broadcast %34 : vector<1x32x1xf32> to vector<2x32x8xf32>
    %36 = arith.addf %32, %35 : vector<2x32x8xf32>
    %c0_15 = arith.constant 0 : index
    %c0_16 = arith.constant 0 : index
    %c0_17 = arith.constant 0 : index
    %37 = vector.load %arg6[%c0_15, %c0_16, %c0_17] : memref<2x32x8xf32, #tpu.memory_space<vmem>>, vector<2x32x8xf32>
    tpu.vector_store %arg6[%c0_15, %c0_16, %c0_17], %36 {strides = array<i32>} : memref<2x32x8xf32, #tpu.memory_space<vmem>>, vector<2x32x8xf32>,
    return
  }
  func.func @transform_0(%arg0: i32) -> (i32, i32, i32) {
    %c0_i32 = arith.constant 0 : i32
    %c0_i32_0 = arith.constant 0 : i32
    %c0_i32_1 = arith.constant 0 : i32
    return %arg0, %c0_i32, %c0_i32_0 : i32, i32, i32
  }
  func.func @transform_1(%arg0: i32) -> (i32, i32) {
    %c0_i32 = arith.constant 0 : i32
    %c0_i32_0 = arith.constant 0 : i32
    %c0_i32_1 = arith.constant 0 : i32
    return %c0_i32, %c0_i32_0 : i32, i32
  }
  func.func @transform_2(%arg0: i32) -> (i32, i32) {
    %c0_i32 = arith.constant 0 : i32
    %c0_i32_0 = arith.constant 0 : i32
    %c0_i32_1 = arith.constant 0 : i32
    return %c0_i32, %c0_i32_0 : i32, i32
  }
  func.func @transform_3(%arg0: i32) -> (i32, i32) {
    %c0_i32 = arith.constant 0 : i32
    %c0_i32_0 = arith.constant 0 : i32
    %c0_i32_1 = arith.constant 0 : i32
    return %c0_i32, %c0_i32_0 : i32, i32
  }
  func.func @transform_4(%arg0: i32) -> (i32, i32) {
    %c0_i32 = arith.constant 0 : i32
    %c0_i32_0 = arith.constant 0 : i32
    %c0_i32_1 = arith.constant 0 : i32
    return %c0_i32, %c0_i32_0 : i32, i32
  }
  func.func @transform_5(%arg0: i32) -> (i32, i32, i32) {
    %c0_i32 = arith.constant 0 : i32
    %c0_i32_0 = arith.constant 0 : i32
    %c0_i32_1 = arith.constant 0 : i32
    return %arg0, %c0_i32, %c0_i32_0 : i32, i32, i32
  }
}

</mosaic_0001>

<llo_original>
// kernel: attention_forward.1
$region0: #{attention_forward.1}
  #allocation0 [shape = 'u32[]', space=smem, size = 0x4, offset = 0x4, fixed_abs, tag = 'smem constant byte address 0x4 - core index']
  #allocation1 [shape = 'u32[144,128]{1,0:T(1,128)}', space=vmem, size = 0x12000, scoped, tag = 'internal scratch']
  %s0 = inlined_call_operand.vmem [shape: f32[2,32,8], index: 0, kind: input, shape index: {}]
  %s1 = inlined_call_operand.vmem [shape: f32[96,32], index: 1, kind: input, shape index: {}]
  %s2 = inlined_call_operand.vmem [shape: f32[96,1], index: 2, kind: input, shape index: {}]
  %s3 = inlined_call_operand.vmem [shape: f32[32,32], index: 3, kind: input, shape index: {}]
  %s4 = inlined_call_operand.vmem [shape: f32[32,1], index: 4, kind: input, shape index: {}]
  %s5 = inlined_call_operand.vmem [shape: f32[2,32,8], index: 5, kind: output, shape index: {}]
  %s6 = sld [smem:[#allocation0]]
  $region30: #{attention_forward.1} parent=0
    _
  %s8 = ssub.s32 1, %s6
  %s9 = scalar_select 0, %s8, %s6
  // Predicated region
  $region2: #{attention_forward.1} parent=0 // pred_check
    _
  $region3: #{attention_forward.1} parent=0 // pred_check_branch
    %11 = sbr.rel (0) target = $region5
  $region4: #{attention_forward.1} parent=0 // pred_region
    _
  $region5: #{attention_forward.1} parent=0 // pred_fallthru
    _
  // Predicated region
  $region6: #{attention_forward.1} parent=0 // pred_check
    _
  $region7: #{attention_forward.1} parent=0 // pred_check_branch
    %13 = sbr.rel (0) target = $region9
  $region8: #{attention_forward.1} parent=0 // pred_region
    _
  $region9: #{attention_forward.1} parent=0 // pred_fallthru
    _
  // Predicated region
  $region10: #{attention_forward.1} parent=0 // pred_check
    _
  $region11: #{attention_forward.1} parent=0 // pred_check_branch
    %15 = sbr.rel (0) target = $region13
  $region12: #{attention_forward.1} parent=0 // pred_region
    _
  $region13: #{attention_forward.1} parent=0 // pred_fallthru
    _
  // Predicated region
  $region14: #{attention_forward.1} parent=0 // pred_check
    _
  $region15: #{attention_forward.1} parent=0 // pred_check_branch
    %17 = sbr.rel (0) target = $region17
  $region16: #{attention_forward.1} parent=0 // pred_region
    _
  $region17: #{attention_forward.1} parent=0 // pred_fallthru
    _
  // Predicated region
  $region18: #{attention_forward.1} parent=0 // pred_check
    _
  $region19: #{attention_forward.1} parent=0 // pred_check_branch
    %19 = sbr.rel (0) target = $region21
  $region20: #{attention_forward.1} parent=0 // pred_region
    _
  $region21: #{attention_forward.1} parent=0 // pred_fallthru
    _
  %v20 = vld [vmem:[%s0] sm:$0xff]
  %v21 = vld [vmem:[%s0 + $0x8] sm:$0xff]
  %v22 = vld [vmem:[%s0 + $0x10] sm:$0xff]
  %v23 = vld [vmem:[%s0 + $0x18] sm:$0xff]
  %v24 = vld [vmem:[%s0 + $0x20] sm:$0xff]
  %v25 = vld [vmem:[%s0 + $0x28] sm:$0xff]
  %v26 = vld [vmem:[%s0 + $0x30] sm:$0xff]
  %v27 = vld [vmem:[%s0 + $0x38] sm:$0xff]
  %v28 = vld [vmem:[%s1] sm:$0xff]
  %v29 = vld [vmem:[%s1 + $0x8] sm:$0xff]
  %v30 = vld [vmem:[%s1 + $0x10] sm:$0xff]
  %v31 = vld [vmem:[%s1 + $0x18] sm:$0xff]
  %v32 = vld [vmem:[%s1 + $0x20] sm:$0xff]
  %v33 = vld [vmem:[%s1 + $0x28] sm:$0xff]
  %v34 = vld [vmem:[%s1 + $0x30] sm:$0xff]
  %v35 = vld [vmem:[%s1 + $0x38] sm:$0xff]
  %v36 = vld [vmem:[%s1 + $0x40] sm:$0xff]
  %v37 = vld [vmem:[%s1 + $0x48] sm:$0xff]
  %v38 = vld [vmem:[%s1 + $0x50] sm:$0xff]
  %v39 = vld [vmem:[%s1 + $0x58] sm:$0xff]
  %v40 = vld [vmem:[%s2] sm:$0xff]
  %v41 = vld [vmem:[%s2 + $0x8] sm:$0xff]
  %v42 = vld [vmem:[%s2 + $0x10] sm:$0xff]
  %v43 = vld [vmem:[%s2 + $0x18] sm:$0xff]
  %v44 = vld [vmem:[%s2 + $0x20] sm:$0xff]
  %v45 = vld [vmem:[%s2 + $0x28] sm:$0xff]
  %v46 = vld [vmem:[%s2 + $0x30] sm:$0xff]
  %v47 = vld [vmem:[%s2 + $0x38] sm:$0xff]
  %v48 = vld [vmem:[%s2 + $0x40] sm:$0xff]
  %v49 = vld [vmem:[%s2 + $0x48] sm:$0xff]
  %v50 = vld [vmem:[%s2 + $0x50] sm:$0xff]
  %v51 = vld [vmem:[%s2 + $0x58] sm:$0xff]
  %53 = vset.pattern.permute.xlu0 0
  %54 = vperm.xlu0 %53, %v40
  %v55 = vpop.permute.xlu0 %54
  %58 = vset.pattern.permute.xlu0 0
  %59 = vperm.xlu0 %58, %v41
  %v60 = vpop.permute.xlu0 %59
  %63 = vset.pattern.permute.xlu0 0
  %64 = vperm.xlu0 %63, %v42
  %v65 = vpop.permute.xlu0 %64
  %68 = vset.pattern.permute.xlu0 0
  %69 = vperm.xlu0 %68, %v43
  %v70 = vpop.permute.xlu0 %69
  %73 = vset.pattern.permute.xlu0 0
  %74 = vperm.xlu0 %73, %v44
  %v75 = vpop.permute.xlu0 %74
  %78 = vset.pattern.permute.xlu0 0
  %79 = vperm.xlu0 %78, %v45
  %v80 = vpop.permute.xlu0 %79
  %83 = vset.pattern.permute.xlu0 0
  %84 = vperm.xlu0 %83, %v46
  %v85 = vpop.permute.xlu0 %84
  %88 = vset.pattern.permute.xlu0 0
  %89 = vperm.xlu0 %88, %v47
  %v90 = vpop.permute.xlu0 %89
  %93 = vset.pattern.permute.xlu0 0
  %94 = vperm.xlu0 %93, %v48
  %v95 = vpop.permute.xlu0 %94
  %98 = vset.pattern.permute.xlu0 0
  %99 = vperm.xlu0 %98, %v49
  %v100 = vpop.permute.xlu0 %99
  %103 = vset.pattern.permute.xlu0 0
  %104 = vperm.xlu0 %103, %v50
  %v105 = vpop.permute.xlu0 %104
  %108 = vset.pattern.permute.xlu0 0
  %109 = vperm.xlu0 %108, %v51
  %v110 = vpop.permute.xlu0 %109
  %vm112 = vcmask 261120
  %v114 = vsel %vm112, %v28, 0
  %v117 = vsel %vm112, %v29, 0
  %v120 = vsel %vm112, %v30, 0
  %v123 = vsel %vm112, %v31, 0
  %v126 = vsel %vm112, %v32, 0
  %v129 = vsel %vm112, %v33, 0
  %v132 = vsel %vm112, %v34, 0
  %v135 = vsel %vm112, %v35, 0
  %v138 = vsel %vm112, %v36, 0
  %v141 = vsel %vm112, %v37, 0
  %v144 = vsel %vm112, %v38, 0
  %v147 = vsel %vm112, %v39, 0
  %149 = vmatprep.subr.mxu0 0.0
  %150 = vmatpush1.msra.mxu0 %v20
  %151 = vmatprep.subr.mxu0 0.0
  %152 = vmatpush1.msra.mxu0 %v21
  %153 = vmatprep.subr.mxu0 0.0
  %154 = vmatpush1.msra.mxu0 %v22
  %155 = vmatprep.subr.mxu0 0.0
  %156 = vmatpush1.msra.mxu0 %v23
  %157 = vmatprep.subr.mxu0 0.0
  %158 = vmatpush1.msra.mxu0 0.0
  %159 = vmatprep.subr.mxu0 0.0
  %160 = vmatpush1.msra.mxu0 0.0
  %161 = vmatprep.subr.mxu0 0.0
  %162 = vmatpush1.msra.mxu0 0.0
  %163 = vmatprep.subr.mxu0 0.0
  %164 = vmatpush1.msra.mxu0 0.0
  %165 = vmatprep.subr.mxu0 0.0
  %166 = vmatpush1.msra.mxu0 0.0
  %167 = vmatprep.subr.mxu0 0.0
  %168 = vmatpush1.msra.mxu0 0.0
  %169 = vmatprep.subr.mxu0 0.0
  %170 = vmatpush1.msra.mxu0 0.0
  %171 = vmatprep.subr.mxu0 0.0
  %172 = vmatpush1.msra.mxu0 0.0
  %173 = vmatprep.subr.mxu0 0.0
  %174 = vmatpush1.msra.mxu0 0.0
  %175 = vmatprep.subr.mxu0 0.0
  %176 = vmatpush1.msra.mxu0 0.0
  %177 = vmatprep.subr.mxu0 0.0
  %178 = vmatpush1.msra.mxu0 0.0
  %179 = vmatprep.subr.mxu0 0.0
  %180 = vmatpush1.msra.mxu0 0.0
  %181 = vmatprep.subr.mxu0 0.0
  %182 = vmatpush1.msra.mxu0 0.0
  %183 = vmatprep.subr.mxu0 0.0
  %184 = vmatpush1.msra.mxu0 0.0
  %185 = vmatprep.subr.mxu0 0.0
  %186 = vmatpush1.msra.mxu0 0.0
  %187 = vmatprep.subr.mxu0 0.0
  %188 = vmatpush1.msra.mxu0 0.0
  %189 = vmatprep.subr.mxu0 0.0
  %190 = vmatpush1.msra.mxu0 0.0
  %191 = vmatprep.subr.mxu0 0.0
  %192 = vmatpush1.msra.mxu0 0.0
  %193 = vmatprep.subr.mxu0 0.0
  %194 = vmatpush1.msra.mxu0 0.0
  %195 = vmatprep.subr.mxu0 0.0
  %196 = vmatpush1.msra.mxu0 0.0
  %197 = vmatprep.subr.mxu0 0.0
  %198 = vmatpush1.msra.mxu0 0.0
  %199 = vmatprep.subr.mxu0 0.0
  %200 = vmatpush1.msra.mxu0 0.0
  %201 = vmatprep.subr.mxu0 0.0
  %202 = vmatpush1.msra.mxu0 0.0
  %203 = vmatprep.subr.mxu0 0.0
  %204 = vmatpush1.msra.mxu0 0.0
  %205 = vmatprep.subr.mxu0 0.0
  %206 = vmatpush1.msra.mxu0 0.0
  %207 = vmatprep.subr.mxu0 0.0
  %208 = vmatpush1.msra.mxu0 0.0
  %209 = vmatprep.subr.mxu0 0.0
  %210 = vmatpush1.msra.mxu0 0.0
  %211 = vmatprep.subr.mxu0 0.0
  %212 = vmatpush1.msra.mxu0 0.0
  %213 = vmatprep.mubr.f32.mxu0 0.0
  %214 = vmatmul.mubr.f32.gmra.mrb[0].mxu0 %v114
  %v215 = vpop.f32.mrb[0].mxu0
  %v216 = vadd.f32 %v55, %v215
  %v217 = vpop.f32.mrb[0].mxu0
  %218 = vmatprep.mubr.f32.mxu0 0.0
  %219 = vmatmul.mubr.f32.gmra.mrb[0].mxu0 %v117
  %v220 = vpop.f32.mrb[0].mxu0
  %v221 = vadd.f32 %v60, %v220
  %v222 = vpop.f32.mrb[0].mxu0
  %223 = vmatprep.mubr.f32.mxu0 0.0
  %224 = vmatmul.mubr.f32.gmra.mrb[0].mxu0 %v120
  %v225 = vpop.f32.mrb[0].mxu0
  %v226 = vadd.f32 %v65, %v225
  %v227 = vpop.f32.mrb[0].mxu0
  %228 = vmatprep.mubr.f32.mxu0 0.0
  %229 = vmatmul.mubr.f32.gmra.mrb[0].mxu0 %v123
  %v230 = vpop.f32.mrb[0].mxu0
  %v231 = vadd.f32 %v70, %v230
  %v232 = vpop.f32.mrb[0].mxu0
  %233 = vmatprep.mubr.f32.mxu0 0.0
  %234 = vmatmul.mubr.f32.gmra.mrb[0].mxu0 %v126
  %v235 = vpop.f32.mrb[0].mxu0
  %v236 = vadd.f32 %v75, %v235
  %v237 = vpop.f32.mrb[0].mxu0
  %238 = vmatprep.mubr.f32.mxu0 0.0
  %239 = vmatmul.mubr.f32.gmra.mrb[0].mxu0 %v129
  %v240 = vpop.f32.mrb[0].mxu0
  %v241 = vadd.f32 %v80, %v240
  %v242 = vpop.f32.mrb[0].mxu0
  %243 = vmatprep.mubr.f32.mxu0 0.0
  %244 = vmatmul.mubr.f32.gmra.mrb[0].mxu0 %v132
  %v245 = vpop.f32.mrb[0].mxu0
  %v246 = vadd.f32 %v85, %v245
  %v247 = vpop.f32.mrb[0].mxu0
  %248 = vmatprep.mubr.f32.mxu0 0.0
  %249 = vmatmul.mubr.f32.gmra.mrb[0].mxu0 %v135
  %v250 = vpop.f32.mrb[0].mxu0
  %v251 = vadd.f32 %v90, %v250
  %v252 = vpop.f32.mrb[0].mxu0
  %253 = vmatprep.mubr.f32.mxu0 0.0
  %254 = vmatmul.mubr.f32.gmra.mrb[0].mxu0 %v138
  %v255 = vpop.f32.mrb[0].mxu0
  %v256 = vadd.f32 %v95, %v255
  %v257 = vpop.f32.mrb[0].mxu0
  %258 = vmatprep.mubr.f32.mxu0 0.0
  %259 = vmatmul.mubr.f32.gmra.mrb[0].mxu0 %v141
  %v260 = vpop.f32.mrb[0].mxu0
  %v261 = vadd.f32 %v100, %v260
  %v262 = vpop.f32.mrb[0].mxu0
  %263 = vmatprep.mubr.f32.mxu0 0.0
  %264 = vmatmul.mubr.f32.gmra.mrb[0].mxu0 %v144
  %v265 = vpop.f32.mrb[0].mxu0
  %v266 = vadd.f32 %v105, %v265
  %v267 = vpop.f32.mrb[0].mxu0
  %268 = vmatprep.mubr.f32.mxu0 0.0
  %269 = vmatmul.mubr.f32.gmra.mrb[0].mxu0 %v147
  %v270 = vpop.f32.mrb[0].mxu0
  %v271 = vadd.f32 %v110, %v270
  %v272 = vpop.f32.mrb[0].mxu0
  %273 = vdwg.mxu0
  %274 = vmatprep.subr.mxu0 0.0
  %275 = vmatpush1.msra.mxu0 %v24
  %276 = vmatprep.subr.mxu0 0.0
  %277 = vmatpush1.msra.mxu0 %v25
  %278 = vmatprep.subr.mxu0 0.0
  %279 = vmatpush1.msra.mxu0 %v26
  %280 = vmatprep.subr.mxu0 0.0
  %281 = vmatpush1.msra.mxu0 %v27
  %282 = vmatprep.subr.mxu0 0.0
  %283 = vmatpush1.msra.mxu0 0.0
  %284 = vmatprep.subr.mxu0 0.0
  %285 = vmatpush1.msra.mxu0 0.0
  %286 = vmatprep.subr.mxu0 0.0
  %287 = vmatpush1.msra.mxu0 0.0
  %288 = vmatprep.subr.mxu0 0.0
  %289 = vmatpush1.msra.mxu0 0.0
  %290 = vmatprep.subr.mxu0 0.0
  %291 = vmatpush1.msra.mxu0 0.0
  %292 = vmatprep.subr.mxu0 0.0
  %293 = vmatpush1.msra.mxu0 0.0
  %294 = vmatprep.subr.mxu0 0.0
  %295 = vmatpush1.msra.mxu0 0.0
  %296 = vmatprep.subr.mxu0 0.0
  %297 = vmatpush1.msra.mxu0 0.0
  %298 = vmatprep.subr.mxu0 0.0
  %299 = vmatpush1.msra.mxu0 0.0
  %300 = vmatprep.subr.mxu0 0.0
  %301 = vmatpush1.msra.mxu0 0.0
  %302 = vmatprep.subr.mxu0 0.0
  %303 = vmatpush1.msra.mxu0 0.0
  %304 = vmatprep.subr.mxu0 0.0
  %305 = vmatpush1.msra.mxu0 0.0
  %306 = vmatprep.subr.mxu0 0.0
  %307 = vmatpush1.msra.mxu0 0.0
  %308 = vmatprep.subr.mxu0 0.0
  %309 = vmatpush1.msra.mxu0 0.0
  %310 = vmatprep.subr.mxu0 0.0
  %311 = vmatpush1.msra.mxu0 0.0
  %312 = vmatprep.subr.mxu0 0.0
  %313 = vmatpush1.msra.mxu0 0.0
  %314 = vmatprep.subr.mxu0 0.0
  %315 = vmatpush1.msra.mxu0 0.0
  %316 = vmatprep.subr.mxu0 0.0
  %317 = vmatpush1.msra.mxu0 0.0
  %318 = vmatprep.subr.mxu0 0.0
  %319 = vmatpush1.msra.mxu0 0.0
  %320 = vmatprep.subr.mxu0 0.0
  %321 = vmatpush1.msra.mxu0 0.0
  %322 = vmatprep.subr.mxu0 0.0
  %323 = vmatpush1.msra.mxu0 0.0
  %324 = vmatprep.subr.mxu0 0.0
  %325 = vmatpush1.msra.mxu0 0.0
  %326 = vmatprep.subr.mxu0 0.0
  %327 = vmatpush1.msra.mxu0 0.0
  %328 = vmatprep.subr.mxu0 0.0
  %329 = vmatpush1.msra.mxu0 0.0
  %330 = vmatprep.subr.mxu0 0.0
  %331 = vmatpush1.msra.mxu0 0.0
  %332 = vmatprep.subr.mxu0 0.0
  %333 = vmatpush1.msra.mxu0 0.0
  %334 = vmatprep.subr.mxu0 0.0
  %335 = vmatpush1.msra.mxu0 0.0
  %336 = vmatprep.subr.mxu0 0.0
  %337 = vmatpush1.msra.mxu0 0.0
  %338 = vmatprep.mubr.f32.mxu0 0.0
  %339 = vmatmul.mubr.f32.gmra.mrb[0].mxu0 %v114
  %v340 = vpop.f32.mrb[0].mxu0
  %v341 = vadd.f32 %v55, %v340
  %v342 = vpop.f32.mrb[0].mxu0
  %343 = vmatprep.mubr.f32.mxu0 0.0
  %344 = vmatmul.mubr.f32.gmra.mrb[0].mxu0 %v117
  %v345 = vpop.f32.mrb[0].mxu0
  %v346 = vadd.f32 %v60, %v345
  %v347 = vpop.f32.mrb[0].mxu0
  %348 = vmatprep.mubr.f32.mxu0 0.0
  %349 = vmatmul.mubr.f32.gmra.mrb[0].mxu0 %v120
  %v350 = vpop.f32.mrb[0].mxu0
  %v351 = vadd.f32 %v65, %v350
  %v352 = vpop.f32.mrb[0].mxu0
  %353 = vmatprep.mubr.f32.mxu0 0.0
  %354 = vmatmul.mubr.f32.gmra.mrb[0].mxu0 %v123
  %v355 = vpop.f32.mrb[0].mxu0
  %v356 = vadd.f32 %v70, %v355
  %v357 = vpop.f32.mrb[0].mxu0
  %358 = vmatprep.mubr.f32.mxu0 0.0
  %359 = vmatmul.mubr.f32.gmra.mrb[0].mxu0 %v126
  %v360 = vpop.f32.mrb[0].mxu0
  %v361 = vadd.f32 %v75, %v360
  %v362 = vpop.f32.mrb[0].mxu0
  %363 = vmatprep.mubr.f32.mxu0 0.0
  %364 = vmatmul.mubr.f32.gmra.mrb[0].mxu0 %v129
  %v365 = vpop.f32.mrb[0].mxu0
  %v366 = vadd.f32 %v80, %v365
  %v367 = vpop.f32.mrb[0].mxu0
  %368 = vmatprep.mubr.f32.mxu0 0.0
  %369 = vmatmul.mubr.f32.gmra.mrb[0].mxu0 %v132
  %v370 = vpop.f32.mrb[0].mxu0
  %v371 = vadd.f32 %v85, %v370
  %v372 = vpop.f32.mrb[0].mxu0
  %373 = vmatprep.mubr.f32.mxu0 0.0
  %374 = vmatmul.mubr.f32.gmra.mrb[0].mxu0 %v135
  %v375 = vpop.f32.mrb[0].mxu0
  %v376 = vadd.f32 %v90, %v375
  %v377 = vpop.f32.mrb[0].mxu0
  %378 = vmatprep.mubr.f32.mxu0 0.0
  %379 = vmatmul.mubr.f32.gmra.mrb[0].mxu0 %v138
  %v380 = vpop.f32.mrb[0].mxu0
  %v381 = vadd.f32 %v95, %v380
  %v382 = vpop.f32.mrb[0].mxu0
  %383 = vmatprep.mubr.f32.mxu0 0.0
  %384 = vmatmul.mubr.f32.gmra.mrb[0].mxu0 %v141
  %v385 = vpop.f32.mrb[0].mxu0
  %v386 = vadd.f32 %v100, %v385
  %v387 = vpop.f32.mrb[0].mxu0
  %388 = vmatprep.mubr.f32.mxu0 0.0
  %389 = vmatmul.mubr.f32.gmra.mrb[0].mxu0 %v144
  %v390 = vpop.f32.mrb[0].mxu0
  %v391 = vadd.f32 %v105, %v390
  %v392 = vpop.f32.mrb[0].mxu0
  %393 = vmatprep.mubr.f32.mxu0 0.0
  %394 = vmatmul.mubr.f32.gmra.mrb[0].mxu0 %v147
  %v395 = vpop.f32.mrb[0].mxu0
  %v396 = vadd.f32 %v110, %v395
  %v397 = vpop.f32.mrb[0].mxu0
  %398 = vdwg.mxu0
  %399 = vxpose.xlu0.b32.start [1/16] %v216, 128
  %400 = vxpose.xlu0.b32.cont [2/16] 0.0, 128
  %401 = vxpose.xlu0.b32.cont [3/16] 0.0, 128
  %402 = vxpose.xlu0.b32.cont [4/16] 0.0, 128
  %403 = vxpose.xlu0.b32.cont [5/16] 0.0, 128
  %404 = vxpose.xlu0.b32.cont [6/16] 0.0, 128
  %405 = vxpose.xlu0.b32.cont [7/16] 0.0, 128
  %406 = vxpose.xlu0.b32.cont [8/16] 0.0, 128
  %407 = vxpose.xlu0.b32.cont [9/16] 0.0, 128
  %408 = vxpose.xlu0.b32.cont [10/16] 0.0, 128
  %409 = vxpose.xlu0.b32.cont [11/16] 0.0, 128
  %410 = vxpose.xlu0.b32.cont [12/16] 0.0, 128
  %411 = vxpose.xlu0.b32.cont [13/16] 0.0, 128
  %412 = vxpose.xlu0.b32.cont [14/16] 0.0, 128
  %413 = vxpose.xlu0.b32.cont [15/16] 0.0, 128
  %414 = vxpose.xlu0.b32.end [16/16] 0.0, 128
  %v415 = vpop.trf.xlu0
  %v416 = vpop.trf.xlu0
  %v417 = vpop.trf.xlu0
  %v418 = vpop.trf.xlu0
  %v419 = vpop.trf.xlu0
  %v420 = vpop.trf.xlu0
  %v421 = vpop.trf.xlu0
  %v422 = vpop.trf.xlu0
  %v423 = vpop.trf.xlu0
  %v424 = vpop.trf.xlu0
  %v425 = vpop.trf.xlu0
  %v426 = vpop.trf.xlu0
  %v427 = vpop.trf.xlu0
  %v428 = vpop.trf.xlu0
  %v429 = vpop.trf.xlu0
  %v430 = vpop.trf.xlu0
  %431 = vxpose.xlu0.b32.start [1/16] %v221, 128
  %432 = vxpose.xlu0.b32.cont [2/16] 0.0, 128
  %433 = vxpose.xlu0.b32.cont [3/16] 0.0, 128
  %434 = vxpose.xlu0.b32.cont [4/16] 0.0, 128
  %435 = vxpose.xlu0.b32.cont [5/16] 0.0, 128
  %436 = vxpose.xlu0.b32.cont [6/16] 0.0, 128
  %437 = vxpose.xlu0.b32.cont [7/16] 0.0, 128
  %438 = vxpose.xlu0.b32.cont [8/16] 0.0, 128
  %439 = vxpose.xlu0.b32.cont [9/16] 0.0, 128
  %440 = vxpose.xlu0.b32.cont [10/16] 0.0, 128
  %441 = vxpose.xlu0.b32.cont [11/16] 0.0, 128
  %442 = vxpose.xlu0.b32.cont [12/16] 0.0, 128
  %443 = vxpose.xlu0.b32.cont [13/16] 0.0, 128
  %444 = vxpose.xlu0.b32.cont [14/16] 0.0, 128
  %445 = vxpose.xlu0.b32.cont [15/16] 0.0, 128
  %446 = vxpose.xlu0.b32.end [16/16] 0.0, 128
  %v447 = vpop.trf.xlu0
  %v448 = vpop.trf.xlu0
  %v449 = vpop.trf.xlu0
  %v450 = vpop.trf.xlu0
  %v451 = vpop.trf.xlu0
  %v452 = vpop.trf.xlu0
  %v453 = vpop.trf.xlu0
  %v454 = vpop.trf.xlu0
  %v455 = vpop.trf.xlu0
  %v456 = vpop.trf.xlu0
  %v457 = vpop.trf.xlu0
  %v458 = vpop.trf.xlu0
  %v459 = vpop.trf.xlu0
  %v460 = vpop.trf.xlu0
  %v461 = vpop.trf.xlu0
  %v462 = vpop.trf.xlu0
  %463 = vxpose.xlu0.b32.start [1/16] %v226, 128
  %464 = vxpose.xlu0.b32.cont [2/16] 0.0, 128
  %465 = vxpose.xlu0.b32.cont [3/16] 0.0, 128
  %466 = vxpose.xlu0.b32.cont [4/16] 0.0, 128
  %467 = vxpose.xlu0.b32.cont [5/16] 0.0, 128
  %468 = vxpose.xlu0.b32.cont [6/16] 0.0, 128
  %469 = vxpose.xlu0.b32.cont [7/16] 0.0, 128
  %470 = vxpose.xlu0.b32.cont [8/16] 0.0, 128
  %471 = vxpose.xlu0.b32.cont [9/16] 0.0, 128
  %472 = vxpose.xlu0.b32.cont [10/16] 0.0, 128
  %473 = vxpose.xlu0.b32.cont [11/16] 0.0, 128
  %474 = vxpose.xlu0.b32.cont [12/16] 0.0, 128
  %475 = vxpose.xlu0.b32.cont [13/16] 0.0, 128
  %476 = vxpose.xlu0.b32.cont [14/16] 0.0, 128
  %477 = vxpose.xlu0.b32.cont [15/16] 0.0, 128
  %478 = vxpose.xlu0.b32.end [16/16] 0.0, 128
  %v479 = vpop.trf.xlu0
  %v480 = vpop.trf.xlu0
  %v481 = vpop.trf.xlu0
  %v482 = vpop.trf.xlu0
  %v483 = vpop.trf.xlu0
  %v484 = vpop.trf.xlu0
  %v485 = vpop.trf.xlu0
  %v486 = vpop.trf.xlu0
  %v487 = vpop.trf.xlu0
  %v488 = vpop.trf.xlu0
  %v489 = vpop.trf.xlu0
  %v490 = vpop.trf.xlu0
  %v491 = vpop.trf.xlu0
  %v492 = vpop.trf.xlu0
  %v493 = vpop.trf.xlu0
  %v494 = vpop.trf.xlu0
  %495 = vxpose.xlu0.b32.start [1/16] %v231, 128
  %496 = vxpose.xlu0.b32.cont [2/16] 0.0, 128
  %497 = vxpose.xlu0.b32.cont [3/16] 0.0, 128
  %498 = vxpose.xlu0.b32.cont [4/16] 0.0, 128
  %499 = vxpose.xlu0.b32.cont [5/16] 0.0, 128
  %500 = vxpose.xlu0.b32.cont [6/16] 0.0, 128
  %501 = vxpose.xlu0.b32.cont [7/16] 0.0, 128
  %502 = vxpose.xlu0.b32.cont [8/16] 0.0, 128
  %503 = vxpose.xlu0.b32.cont [9/16] 0.0, 128
  %504 = vxpose.xlu0.b32.cont [10/16] 0.0, 128
  %505 = vxpose.xlu0.b32.cont [11/16] 0.0, 128
  %506 = vxpose.xlu0.b32.cont [12/16] 0.0, 128
  %507 = vxpose.xlu0.b32.cont [13/16] 0.0, 128
  %508 = vxpose.xlu0.b32.cont [14/16] 0.0, 128
  %509 = vxpose.xlu0.b32.cont [15/16] 0.0, 128
  %510 = vxpose.xlu0.b32.end [16/16] 0.0, 128
  %v511 = vpop.trf.xlu0
  %v512 = vpop.trf.xlu0
  %v513 = vpop.trf.xlu0
  %v514 = vpop.trf.xlu0
  %v515 = vpop.trf.xlu0
  %v516 = vpop.trf.xlu0
  %v517 = vpop.trf.xlu0
  %v518 = vpop.trf.xlu0
  %v519 = vpop.trf.xlu0
  %v520 = vpop.trf.xlu0
  %v521 = vpop.trf.xlu0
  %v522 = vpop.trf.xlu0
  %v523 = vpop.trf.xlu0
  %v524 = vpop.trf.xlu0
  %v525 = vpop.trf.xlu0
  %v526 = vpop.trf.xlu0
  %527 = vxpose.xlu0.b32.start [1/16] %v341, 128
  %528 = vxpose.xlu0.b32.cont [2/16] 0.0, 128
  %529 = vxpose.xlu0.b32.cont [3/16] 0.0, 128
  %530 = vxpose.xlu0.b32.cont [4/16] 0.0, 128
  %531 = vxpose.xlu0.b32.cont [5/16] 0.0, 128
  %532 = vxpose.xlu0.b32.cont [6/16] 0.0, 128
  %533 = vxpose.xlu0.b32.cont [7/16] 0.0, 128
  %534 = vxpose.xlu0.b32.cont [8/16] 0.0, 128
  %535 = vxpose.xlu0.b32.cont [9/16] 0.0, 128
  %536 = vxpose.xlu0.b32.cont [10/16] 0.0, 128
  %537 = vxpose.xlu0.b32.cont [11/16] 0.0, 128
  %538 = vxpose.xlu0.b32.cont [12/16] 0.0, 128
  %539 = vxpose.xlu0.b32.cont [13/16] 0.0, 128
  %540 = vxpose.xlu0.b32.cont [14/16] 0.0, 128
  %541 = vxpose.xlu0.b32.cont [15/16] 0.0, 128
  %542 = vxpose.xlu0.b32.end [16/16] 0.0, 128
  %v543 = vpop.trf.xlu0
  %v544 = vpop.trf.xlu0
  %v545 = vpop.trf.xlu0
  %v546 = vpop.trf.xlu0
  %v547 = vpop.trf.xlu0
  %v548 = vpop.trf.xlu0
  %v549 = vpop.trf.xlu0
  %v550 = vpop.trf.xlu0
  %v551 = vpop.trf.xlu0
  %v552 = vpop.trf.xlu0
  %v553 = vpop.trf.xlu0
  %v554 = vpop.trf.xlu0
  %v555 = vpop.trf.xlu0
  %v556 = vpop.trf.xlu0
  %v557 = vpop.trf.xlu0
  %v558 = vpop.trf.xlu0
  %559 = vxpose.xlu0.b32.start [1/16] %v346, 128
  %560 = vxpose.xlu0.b32.cont [2/16] 0.0, 128
  %561 = vxpose.xlu0.b32.cont [3/16] 0.0, 128
  %562 = vxpose.xlu0.b32.cont [4/16] 0.0, 128
  %563 = vxpose.xlu0.b32.cont [5/16] 0.0, 128
  %564 = vxpose.xlu0.b32.cont [6/16] 0.0, 128
  %565 = vxpose.xlu0.b32.cont [7/16] 0.0, 128
  %566 = vxpose.xlu0.b32.cont [8/16] 0.0, 128
  %567 = vxpose.xlu0.b32.cont [9/16] 0.0, 128
  %568 = vxpose.xlu0.b32.cont [10/16] 0.0, 128
  %569 = vxpose.xlu0.b32.cont [11/16] 0.0, 128
  %570 = vxpose.xlu0.b32.cont [12/16] 0.0, 128
  %571 = vxpose.xlu0.b32.cont [13/16] 0.0, 128
  %572 = vxpose.xlu0.b32.cont [14/16] 0.0, 128
  %573 = vxpose.xlu0.b32.cont [15/16] 0.0, 128
  %574 = vxpose.xlu0.b32.end [16/16] 0.0, 128
  %v575 = vpop.trf.xlu0
  %v576 = vpop.trf.xlu0
  %v577 = vpop.trf.xlu0
  %v578 = vpop.trf.xlu0
  %v579 = vpop.trf.xlu0
  %v580 = vpop.trf.xlu0
  %v581 = vpop.trf.xlu0
  %v582 = vpop.trf.xlu0
  %v583 = vpop.trf.xlu0
  %v584 = vpop.trf.xlu0
  %v585 = vpop.trf.xlu0
  %v586 = vpop.trf.xlu0
  %v587 = vpop.trf.xlu0
  %v588 = vpop.trf.xlu0
  %v589 = vpop.trf.xlu0
  %v590 = vpop.trf.xlu0
  %591 = vxpose.xlu0.b32.start [1/16] %v351, 128
  %592 = vxpose.xlu0.b32.cont [2/16] 0.0, 128
  %593 = vxpose.xlu0.b32.cont [3/16] 0.0, 128
  %594 = vxpose.xlu0.b32.cont [4/16] 0.0, 128
  %595 = vxpose.xlu0.b32.cont [5/16] 0.0, 128
  %596 = vxpose.xlu0.b32.cont [6/16] 0.0, 128
  %597 = vxpose.xlu0.b32.cont [7/16] 0.0, 128
  %598 = vxpose.xlu0.b32.cont [8/16] 0.0, 128
  %599 = vxpose.xlu0.b32.cont [9/16] 0.0, 128
  %600 = vxpose.xlu0.b32.cont [10/16] 0.0, 128
  %601 = vxpose.xlu0.b32.cont [11/16] 0.0, 128
  %602 = vxpose.xlu0.b32.cont [12/16] 0.0, 128
  %603 = vxpose.xlu0.b32.cont [13/16] 0.0, 128
  %604 = vxpose.xlu0.b32.cont [14/16] 0.0, 128
  %605 = vxpose.xlu0.b32.cont [15/16] 0.0, 128
  %606 = vxpose.xlu0.b32.end [16/16] 0.0, 128
  %v607 = vpop.trf.xlu0
  %v608 = vpop.trf.xlu0
  %v609 = vpop.trf.xlu0
  %v610 = vpop.trf.xlu0
  %v611 = vpop.trf.xlu0
  %v612 = vpop.trf.xlu0
  %v613 = vpop.trf.xlu0
  %v614 = vpop.trf.xlu0
  %v615 = vpop.trf.xlu0
  %v616 = vpop.trf.xlu0
  %v617 = vpop.trf.xlu0
  %v618 = vpop.trf.xlu0
  %v619 = vpop.trf.xlu0
  %v620 = vpop.trf.xlu0
  %v621 = vpop.trf.xlu0
  %v622 = vpop.trf.xlu0
  %623 = vxpose.xlu0.b32.start [1/16] %v356, 128
  %624 = vxpose.xlu0.b32.cont [2/16] 0.0, 128
  %625 = vxpose.xlu0.b32.cont [3/16] 0.0, 128
  %626 = vxpose.xlu0.b32.cont [4/16] 0.0, 128
  %627 = vxpose.xlu0.b32.cont [5/16] 0.0, 128
  %628 = vxpose.xlu0.b32.cont [6/16] 0.0, 128
  %629 = vxpose.xlu0.b32.cont [7/16] 0.0, 128
  %630 = vxpose.xlu0.b32.cont [8/16] 0.0, 128
  %631 = vxpose.xlu0.b32.cont [9/16] 0.0, 128
  %632 = vxpose.xlu0.b32.cont [10/16] 0.0, 128
  %633 = vxpose.xlu0.b32.cont [11/16] 0.0, 128
  %634 = vxpose.xlu0.b32.cont [12/16] 0.0, 128
  %635 = vxpose.xlu0.b32.cont [13/16] 0.0, 128
  %636 = vxpose.xlu0.b32.cont [14/16] 0.0, 128
  %637 = vxpose.xlu0.b32.cont [15/16] 0.0, 128
  %638 = vxpose.xlu0.b32.end [16/16] 0.0, 128
  %v639 = vpop.trf.xlu0
  %v640 = vpop.trf.xlu0
  %v641 = vpop.trf.xlu0
  %v642 = vpop.trf.xlu0
  %v643 = vpop.trf.xlu0
  %v644 = vpop.trf.xlu0
  %v645 = vpop.trf.xlu0
  %v646 = vpop.trf.xlu0
  %v647 = vpop.trf.xlu0
  %v648 = vpop.trf.xlu0
  %v649 = vpop.trf.xlu0
  %v650 = vpop.trf.xlu0
  %v651 = vpop.trf.xlu0
  %v652 = vpop.trf.xlu0
  %v653 = vpop.trf.xlu0
  %v654 = vpop.trf.xlu0
  %vm655 = vcmask 64512
  %v657 = vsel %vm655, %v415, 0
  %659 = vmatprep.subr.mxu0 0.0
  %660 = vmatpush1.msra.mxu0 %v236
  %661 = vmatprep.subr.mxu0 0.0
  %662 = vmatpush1.msra.mxu0 0.0
  %663 = vmatprep.subr.mxu0 0.0
  %664 = vmatpush1.msra.mxu0 0.0
  %665 = vmatprep.subr.mxu0 0.0
  %666 = vmatpush1.msra.mxu0 0.0
  %667 = vmatprep.subr.mxu0 0.0
  %668 = vmatpush1.msra.mxu0 0.0
  %669 = vmatprep.subr.mxu0 0.0
  %670 = vmatpush1.msra.mxu0 0.0
  %671 = vmatprep.subr.mxu0 0.0
  %672 = vmatpush1.msra.mxu0 0.0
  %673 = vmatprep.subr.mxu0 0.0
  %674 = vmatpush1.msra.mxu0 0.0
  %675 = vmatprep.subr.mxu0 0.0
  %676 = vmatpush1.msra.mxu0 0.0
  %677 = vmatprep.subr.mxu0 0.0
  %678 = vmatpush1.msra.mxu0 0.0
  %679 = vmatprep.subr.mxu0 0.0
  %680 = vmatpush1.msra.mxu0 0.0
  %681 = vmatprep.subr.mxu0 0.0
  %682 = vmatpush1.msra.mxu0 0.0
  %683 = vmatprep.subr.mxu0 0.0
  %684 = vmatpush1.msra.mxu0 0.0
  %685 = vmatprep.subr.mxu0 0.0
  %686 = vmatpush1.msra.mxu0 0.0
  %687 = vmatprep.subr.mxu0 0.0
  %688 = vmatpush1.msra.mxu0 0.0
  %689 = vmatprep.subr.mxu0 0.0
  %690 = vmatpush1.msra.mxu0 0.0
  %691 = vmatprep.subr.mxu0 0.0
  %692 = vmatpush1.msra.mxu0 0.0
  %693 = vmatprep.subr.mxu0 0.0
  %694 = vmatpush1.msra.mxu0 0.0
  %695 = vmatprep.subr.mxu0 0.0
  %696 = vmatpush1.msra.mxu0 0.0
  %697 = vmatprep.subr.mxu0 0.0
  %698 = vmatpush1.msra.mxu0 0.0
  %699 = vmatprep.subr.mxu0 0.0
  %700 = vmatpush1.msra.mxu0 0.0
  %701 = vmatprep.subr.mxu0 0.0
  %702 = vmatpush1.msra.mxu0 0.0
  %703 = vmatprep.subr.mxu0 0.0
  %704 = vmatpush1.msra.mxu0 0.0
  %705 = vmatprep.subr.mxu0 0.0
  %706 = vmatpush1.msra.mxu0 0.0
  %707 = vmatprep.subr.mxu0 0.0
  %708 = vmatpush1.msra.mxu0 0.0
  %709 = vmatprep.subr.mxu0 0.0
  %710 = vmatpush1.msra.mxu0 0.0
  %711 = vmatprep.subr.mxu0 0.0
  %712 = vmatpush1.msra.mxu0 0.0
  %713 = vmatprep.subr.mxu0 0.0
  %714 = vmatpush1.msra.mxu0 0.0
  %715 = vmatprep.subr.mxu0 0.0
  %716 = vmatpush1.msra.mxu0 0.0
  %717 = vmatprep.subr.mxu0 0.0
  %718 = vmatpush1.msra.mxu0 0.0
  %719 = vmatprep.subr.mxu0 0.0
  %720 = vmatpush1.msra.mxu0 0.0
  %721 = vmatprep.subr.mxu0 0.0
  %722 = vmatpush1.msra.mxu0 0.0
  %723 = vmatprep.mubr.f32.mxu0 0.0
  %724 = vmatmul.mubr.f32.gmra.mrb[0].mxu0 %v657
  %v725 = vpop.f32.mrb[0].mxu0
  %v726 = vadd.f32 0.0, %v725
  %v727 = vpop.f32.mrb[0].mxu0
  %728 = vdwg.mxu0
  %v730 = vsel %vm655, %v447, 0
  %732 = vmatprep.subr.mxu0 0.0
  %733 = vmatpush1.msra.mxu0 %v241
  %734 = vmatprep.subr.mxu0 0.0
  %735 = vmatpush1.msra.mxu0 0.0
  %736 = vmatprep.subr.mxu0 0.0
  %737 = vmatpush1.msra.mxu0 0.0
  %738 = vmatprep.subr.mxu0 0.0
  %739 = vmatpush1.msra.mxu0 0.0
  %740 = vmatprep.subr.mxu0 0.0
  %741 = vmatpush1.msra.mxu0 0.0
  %742 = vmatprep.subr.mxu0 0.0
  %743 = vmatpush1.msra.mxu0 0.0
  %744 = vmatprep.subr.mxu0 0.0
  %745 = vmatpush1.msra.mxu0 0.0
  %746 = vmatprep.subr.mxu0 0.0
  %747 = vmatpush1.msra.mxu0 0.0
  %748 = vmatprep.subr.mxu0 0.0
  %749 = vmatpush1.msra.mxu0 0.0
  %750 = vmatprep.subr.mxu0 0.0
  %751 = vmatpush1.msra.mxu0 0.0
  %752 = vmatprep.subr.mxu0 0.0
  %753 = vmatpush1.msra.mxu0 0.0
  %754 = vmatprep.subr.mxu0 0.0
  %755 = vmatpush1.msra.mxu0 0.0
  %756 = vmatprep.subr.mxu0 0.0
  %757 = vmatpush1.msra.mxu0 0.0
  %758 = vmatprep.subr.mxu0 0.0
  %759 = vmatpush1.msra.mxu0 0.0
  %760 = vmatprep.subr.mxu0 0.0
  %761 = vmatpush1.msra.mxu0 0.0
  %762 = vmatprep.subr.mxu0 0.0
  %763 = vmatpush1.msra.mxu0 0.0
  %764 = vmatprep.subr.mxu0 0.0
  %765 = vmatpush1.msra.mxu0 0.0
  %766 = vmatprep.subr.mxu0 0.0
  %767 = vmatpush1.msra.mxu0 0.0
  %768 = vmatprep.subr.mxu0 0.0
  %769 = vmatpush1.msra.mxu0 0.0
  %770 = vmatprep.subr.mxu0 0.0
  %771 = vmatpush1.msra.mxu0 0.0
  %772 = vmatprep.subr.mxu0 0.0
  %773 = vmatpush1.msra.mxu0 0.0
  %774 = vmatprep.subr.mxu0 0.0
  %775 = vmatpush1.msra.mxu0 0.0
  %776 = vmatprep.subr.mxu0 0.0
  %777 = vmatpush1.msra.mxu0 0.0
  %778 = vmatprep.subr.mxu0 0.0
  %779 = vmatpush1.msra.mxu0 0.0
  %780 = vmatprep.subr.mxu0 0.0
  %781 = vmatpush1.msra.mxu0 0.0
  %782 = vmatprep.subr.mxu0 0.0
  %783 = vmatpush1.msra.mxu0 0.0
  %784 = vmatprep.subr.mxu0 0.0
  %785 = vmatpush1.msra.mxu0 0.0
  %786 = vmatprep.subr.mxu0 0.0
  %787 = vmatpush1.msra.mxu0 0.0
  %788 = vmatprep.subr.mxu0 0.0
  %789 = vmatpush1.msra.mxu0 0.0
  %790 = vmatprep.subr.mxu0 0.0
  %791 = vmatpush1.msra.mxu0 0.0
  %792 = vmatprep.subr.mxu0 0.0
  %793 = vmatpush1.msra.mxu0 0.0
  %794 = vmatprep.subr.mxu0 0.0
  %795 = vmatpush1.msra.mxu0 0.0
  %796 = vmatprep.mubr.f32.mxu0 0.0
  %797 = vmatmul.mubr.f32.gmra.mrb[0].mxu0 %v730
  %v798 = vpop.f32.mrb[0].mxu0
  %v799 = vadd.f32 0.0, %v798
  %v800 = vpop.f32.mrb[0].mxu0
  %801 = vdwg.mxu0
  %v803 = vsel %vm655, %v479, 0
  %805 = vmatprep.subr.mxu0 0.0
  %806 = vmatpush1.msra.mxu0 %v246
  %807 = vmatprep.subr.mxu0 0.0
  %808 = vmatpush1.msra.mxu0 0.0
  %809 = vmatprep.subr.mxu0 0.0
  %810 = vmatpush1.msra.mxu0 0.0
  %811 = vmatprep.subr.mxu0 0.0
  %812 = vmatpush1.msra.mxu0 0.0
  %813 = vmatprep.subr.mxu0 0.0
  %814 = vmatpush1.msra.mxu0 0.0
  %815 = vmatprep.subr.mxu0 0.0
  %816 = vmatpush1.msra.mxu0 0.0
  %817 = vmatprep.subr.mxu0 0.0
  %818 = vmatpush1.msra.mxu0 0.0
  %819 = vmatprep.subr.mxu0 0.0
  %820 = vmatpush1.msra.mxu0 0.0
  %821 = vmatprep.subr.mxu0 0.0
  %822 = vmatpush1.msra.mxu0 0.0
  %823 = vmatprep.subr.mxu0 0.0
  %824 = vmatpush1.msra.mxu0 0.0
  %825 = vmatprep.subr.mxu0 0.0
  %826 = vmatpush1.msra.mxu0 0.0
  %827 = vmatprep.subr.mxu0 0.0
  %828 = vmatpush1.msra.mxu0 0.0
  %829 = vmatprep.subr.mxu0 0.0
  %830 = vmatpush1.msra.mxu0 0.0
  %831 = vmatprep.subr.mxu0 0.0
  %832 = vmatpush1.msra.mxu0 0.0
  %833 = vmatprep.subr.mxu0 0.0
  %834 = vmatpush1.msra.mxu0 0.0
  %835 = vmatprep.subr.mxu0 0.0
  %836 = vmatpush1.msra.mxu0 0.0
  %837 = vmatprep.subr.mxu0 0.0
  %838 = vmatpush1.msra.mxu0 0.0
  %839 = vmatprep.subr.mxu0 0.0
  %840 = vmatpush1.msra.mxu0 0.0
  %841 = vmatprep.subr.mxu0 0.0
  %842 = vmatpush1.msra.mxu0 0.0
  %843 = vmatprep.subr.mxu0 0.0
  %844 = vmatpush1.msra.mxu0 0.0
  %845 = vmatprep.subr.mxu0 0.0
  %846 = vmatpush1.msra.mxu0 0.0
  %847 = vmatprep.subr.mxu0 0.0
  %848 = vmatpush1.msra.mxu0 0.0
  %849 = vmatprep.subr.mxu0 0.0
  %850 = vmatpush1.msra.mxu0 0.0
  %851 = vmatprep.subr.mxu0 0.0
  %852 = vmatpush1.msra.mxu0 0.0
  %853 = vmatprep.subr.mxu0 0.0
  %854 = vmatpush1.msra.mxu0 0.0
  %855 = vmatprep.subr.mxu0 0.0
  %856 = vmatpush1.msra.mxu0 0.0
  %857 = vmatprep.subr.mxu0 0.0
  %858 = vmatpush1.msra.mxu0 0.0
  %859 = vmatprep.subr.mxu0 0.0
  %860 = vmatpush1.msra.mxu0 0.0
  %861 = vmatprep.subr.mxu0 0.0
  %862 = vmatpush1.msra.mxu0 0.0
  %863 = vmatprep.subr.mxu0 0.0
  %864 = vmatpush1.msra.mxu0 0.0
  %865 = vmatprep.subr.mxu0 0.0
  %866 = vmatpush1.msra.mxu0 0.0
  %867 = vmatprep.subr.mxu0 0.0
  %868 = vmatpush1.msra.mxu0 0.0
  %869 = vmatprep.mubr.f32.mxu0 0.0
  %870 = vmatmul.mubr.f32.gmra.mrb[0].mxu0 %v803
  %v871 = vpop.f32.mrb[0].mxu0
  %v872 = vadd.f32 0.0, %v871
  %v873 = vpop.f32.mrb[0].mxu0
  %874 = vdwg.mxu0
  %v876 = vsel %vm655, %v511, 0
  %878 = vmatprep.subr.mxu0 0.0
  %879 = vmatpush1.msra.mxu0 %v251
  %880 = vmatprep.subr.mxu0 0.0
  %881 = vmatpush1.msra.mxu0 0.0
  %882 = vmatprep.subr.mxu0 0.0
  %883 = vmatpush1.msra.mxu0 0.0
  %884 = vmatprep.subr.mxu0 0.0
  %885 = vmatpush1.msra.mxu0 0.0
  %886 = vmatprep.subr.mxu0 0.0
  %887 = vmatpush1.msra.mxu0 0.0
  %888 = vmatprep.subr.mxu0 0.0
  %889 = vmatpush1.msra.mxu0 0.0
  %890 = vmatprep.subr.mxu0 0.0
  %891 = vmatpush1.msra.mxu0 0.0
  %892 = vmatprep.subr.mxu0 0.0
  %893 = vmatpush1.msra.mxu0 0.0
  %894 = vmatprep.subr.mxu0 0.0
  %895 = vmatpush1.msra.mxu0 0.0
  %896 = vmatprep.subr.mxu0 0.0
  %897 = vmatpush1.msra.mxu0 0.0
  %898 = vmatprep.subr.mxu0 0.0
  %899 = vmatpush1.msra.mxu0 0.0
  %900 = vmatprep.subr.mxu0 0.0
  %901 = vmatpush1.msra.mxu0 0.0
  %902 = vmatprep.subr.mxu0 0.0
  %903 = vmatpush1.msra.mxu0 0.0
  %904 = vmatprep.subr.mxu0 0.0
  %905 = vmatpush1.msra.mxu0 0.0
  %906 = vmatprep.subr.mxu0 0.0
  %907 = vmatpush1.msra.mxu0 0.0
  %908 = vmatprep.subr.mxu0 0.0
  %909 = vmatpush1.msra.mxu0 0.0
  %910 = vmatprep.subr.mxu0 0.0
  %911 = vmatpush1.msra.mxu0 0.0
  %912 = vmatprep.subr.mxu0 0.0
  %913 = vmatpush1.msra.mxu0 0.0
  %914 = vmatprep.subr.mxu0 0.0
  %915 = vmatpush1.msra.mxu0 0.0
  %916 = vmatprep.subr.mxu0 0.0
  %917 = vmatpush1.msra.mxu0 0.0
  %918 = vmatprep.subr.mxu0 0.0
  %919 = vmatpush1.msra.mxu0 0.0
  %920 = vmatprep.subr.mxu0 0.0
  %921 = vmatpush1.msra.mxu0 0.0
  %922 = vmatprep.subr.mxu0 0.0
  %923 = vmatpush1.msra.mxu0 0.0
  %924 = vmatprep.subr.mxu0 0.0
  %925 = vmatpush1.msra.mxu0 0.0
  %926 = vmatprep.subr.mxu0 0.0
  %927 = vmatpush1.msra.mxu0 0.0
  %928 = vmatprep.subr.mxu0 0.0
  %929 = vmatpush1.msra.mxu0 0.0
  %930 = vmatprep.subr.mxu0 0.0
  %931 = vmatpush1.msra.mxu0 0.0
  %932 = vmatprep.subr.mxu0 0.0
  %933 = vmatpush1.msra.mxu0 0.0
  %934 = vmatprep.subr.mxu0 0.0
  %935 = vmatpush1.msra.mxu0 0.0
  %936 = vmatprep.subr.mxu0 0.0
  %937 = vmatpush1.msra.mxu0 0.0
  %938 = vmatprep.subr.mxu0 0.0
  %939 = vmatpush1.msra.mxu0 0.0
  %940 = vmatprep.subr.mxu0 0.0
  %941 = vmatpush1.msra.mxu0 0.0
  %942 = vmatprep.mubr.f32.mxu0 0.0
  %943 = vmatmul.mubr.f32.gmra.mrb[0].mxu0 %v876
  %v944 = vpop.f32.mrb[0].mxu0
  %v945 = vadd.f32 0.0, %v944
  %v946 = vpop.f32.mrb[0].mxu0
  %947 = vdwg.mxu0
  %v949 = vsel %vm655, %v543, 0
  %951 = vmatprep.subr.mxu0 0.0
  %952 = vmatpush1.msra.mxu0 %v361
  %953 = vmatprep.subr.mxu0 0.0
  %954 = vmatpush1.msra.mxu0 0.0
  %955 = vmatprep.subr.mxu0 0.0
  %956 = vmatpush1.msra.mxu0 0.0
  %957 = vmatprep.subr.mxu0 0.0
  %958 = vmatpush1.msra.mxu0 0.0
  %959 = vmatprep.subr.mxu0 0.0
  %960 = vmatpush1.msra.mxu0 0.0
  %961 = vmatprep.subr.mxu0 0.0
  %962 = vmatpush1.msra.mxu0 0.0
  %963 = vmatprep.subr.mxu0 0.0
  %964 = vmatpush1.msra.mxu0 0.0
  %965 = vmatprep.subr.mxu0 0.0
  %966 = vmatpush1.msra.mxu0 0.0
  %967 = vmatprep.subr.mxu0 0.0
  %968 = vmatpush1.msra.mxu0 0.0
  %969 = vmatprep.subr.mxu0 0.0
  %970 = vmatpush1.msra.mxu0 0.0
  %971 = vmatprep.subr.mxu0 0.0
  %972 = vmatpush1.msra.mxu0 0.0
  %973 = vmatprep.subr.mxu0 0.0
  %974 = vmatpush1.msra.mxu0 0.0
  %975 = vmatprep.subr.mxu0 0.0
  %976 = vmatpush1.msra.mxu0 0.0
  %977 = vmatprep.subr.mxu0 0.0
  %978 = vmatpush1.msra.mxu0 0.0
  %979 = vmatprep.subr.mxu0 0.0
  %980 = vmatpush1.msra.mxu0 0.0
  %981 = vmatprep.subr.mxu0 0.0
  %982 = vmatpush1.msra.mxu0 0.0
  %983 = vmatprep.subr.mxu0 0.0
  %984 = vmatpush1.msra.mxu0 0.0
  %985 = vmatprep.subr.mxu0 0.0
  %986 = vmatpush1.msra.mxu0 0.0
  %987 = vmatprep.subr.mxu0 0.0
  %988 = vmatpush1.msra.mxu0 0.0
  %989 = vmatprep.subr.mxu0 0.0
  %990 = vmatpush1.msra.mxu0 0.0
  %991 = vmatprep.subr.mxu0 0.0
  %992 = vmatpush1.msra.mxu0 0.0
  %993 = vmatprep.subr.mxu0 0.0
  %994 = vmatpush1.msra.mxu0 0.0
  %995 = vmatprep.subr.mxu0 0.0
  %996 = vmatpush1.msra.mxu0 0.0
  %997 = vmatprep.subr.mxu0 0.0
  %998 = vmatpush1.msra.mxu0 0.0
  %999 = vmatprep.subr.mxu0 0.0
  %1000 = vmatpush1.msra.mxu0 0.0
  %1001 = vmatprep.subr.mxu0 0.0
  %1002 = vmatpush1.msra.mxu0 0.0
  %1003 = vmatprep.subr.mxu0 0.0
  %1004 = vmatpush1.msra.mxu0 0.0
  %1005 = vmatprep.subr.mxu0 0.0
  %1006 = vmatpush1.msra.mxu0 0.0
  %1007 = vmatprep.subr.mxu0 0.0
  %1008 = vmatpush1.msra.mxu0 0.0
  %1009 = vmatprep.subr.mxu0 0.0
  %1010 = vmatpush1.msra.mxu0 0.0
  %1011 = vmatprep.subr.mxu0 0.0
  %1012 = vmatpush1.msra.mxu0 0.0
  %1013 = vmatprep.subr.mxu0 0.0
  %1014 = vmatpush1.msra.mxu0 0.0
  %1015 = vmatprep.mubr.f32.mxu0 0.0
  %1016 = vmatmul.mubr.f32.gmra.mrb[0].mxu0 %v949
  %v1017 = vpop.f32.mrb[0].mxu0
  %v1018 = vadd.f32 0.0, %v1017
  %v1019 = vpop.f32.mrb[0].mxu0
  %1020 = vdwg.mxu0
  %v1022 = vsel %vm655, %v575, 0
  %1024 = vmatprep.subr.mxu0 0.0
  %1025 = vmatpush1.msra.mxu0 %v366
  %1026 = vmatprep.subr.mxu0 0.0
  %1027 = vmatpush1.msra.mxu0 0.0
  %1028 = vmatprep.subr.mxu0 0.0
  %1029 = vmatpush1.msra.mxu0 0.0
  %1030 = vmatprep.subr.mxu0 0.0
  %1031 = vmatpush1.msra.mxu0 0.0
  %1032 = vmatprep.subr.mxu0 0.0
  %1033 = vmatpush1.msra.mxu0 0.0
  %1034 = vmatprep.subr.mxu0 0.0
  %1035 = vmatpush1.msra.mxu0 0.0
  %1036 = vmatprep.subr.mxu0 0.0
  %1037 = vmatpush1.msra.mxu0 0.0
  %1038 = vmatprep.subr.mxu0 0.0
  %1039 = vmatpush1.msra.mxu0 0.0
  %1040 = vmatprep.subr.mxu0 0.0
  %1041 = vmatpush1.msra.mxu0 0.0
  %1042 = vmatprep.subr.mxu0 0.0
  %1043 = vmatpush1.msra.mxu0 0.0
  %1044 = vmatprep.subr.mxu0 0.0
  %1045 = vmatpush1.msra.mxu0 0.0
  %1046 = vmatprep.subr.mxu0 0.0
  %1047 = vmatpush1.msra.mxu0 0.0
  %1048 = vmatprep.subr.mxu0 0.0
  %1049 = vmatpush1.msra.mxu0 0.0
  %1050 = vmatprep.subr.mxu0 0.0
  %1051 = vmatpush1.msra.mxu0 0.0
  %1052 = vmatprep.subr.mxu0 0.0
  %1053 = vmatpush1.msra.mxu0 0.0
  %1054 = vmatprep.subr.mxu0 0.0
  %1055 = vmatpush1.msra.mxu0 0.0
  %1056 = vmatprep.subr.mxu0 0.0
  %1057 = vmatpush1.msra.mxu0 0.0
  %1058 = vmatprep.subr.mxu0 0.0
  %1059 = vmatpush1.msra.mxu0 0.0
  %1060 = vmatprep.subr.mxu0 0.0
  %1061 = vmatpush1.msra.mxu0 0.0
  %1062 = vmatprep.subr.mxu0 0.0
  %1063 = vmatpush1.msra.mxu0 0.0
  %1064 = vmatprep.subr.mxu0 0.0
  %1065 = vmatpush1.msra.mxu0 0.0
  %1066 = vmatprep.subr.mxu0 0.0
  %1067 = vmatpush1.msra.mxu0 0.0
  %1068 = vmatprep.subr.mxu0 0.0
  %1069 = vmatpush1.msra.mxu0 0.0
  %1070 = vmatprep.subr.mxu0 0.0
  %1071 = vmatpush1.msra.mxu0 0.0
  %1072 = vmatprep.subr.mxu0 0.0
  %1073 = vmatpush1.msra.mxu0 0.0
  %1074 = vmatprep.subr.mxu0 0.0
  %1075 = vmatpush1.msra.mxu0 0.0
  %1076 = vmatprep.subr.mxu0 0.0
  %1077 = vmatpush1.msra.mxu0 0.0
  %1078 = vmatprep.subr.mxu0 0.0
  %1079 = vmatpush1.msra.mxu0 0.0
  %1080 = vmatprep.subr.mxu0 0.0
  %1081 = vmatpush1.msra.mxu0 0.0
  %1082 = vmatprep.subr.mxu0 0.0
  %1083 = vmatpush1.msra.mxu0 0.0
  %1084 = vmatprep.subr.mxu0 0.0
  %1085 = vmatpush1.msra.mxu0 0.0
  %1086 = vmatprep.subr.mxu0 0.0
  %1087 = vmatpush1.msra.mxu0 0.0
  %1088 = vmatprep.mubr.f32.mxu0 0.0
  %1089 = vmatmul.mubr.f32.gmra.mrb[0].mxu0 %v1022
  %v1090 = vpop.f32.mrb[0].mxu0
  %v1091 = vadd.f32 0.0, %v1090
  %v1092 = vpop.f32.mrb[0].mxu0
  %1093 = vdwg.mxu0
  %v1095 = vsel %vm655, %v607, 0
  %1097 = vmatprep.subr.mxu0 0.0
  %1098 = vmatpush1.msra.mxu0 %v371
  %1099 = vmatprep.subr.mxu0 0.0
  %1100 = vmatpush1.msra.mxu0 0.0
  %1101 = vmatprep.subr.mxu0 0.0
  %1102 = vmatpush1.msra.mxu0 0.0
  %1103 = vmatprep.subr.mxu0 0.0
  %1104 = vmatpush1.msra.mxu0 0.0
  %1105 = vmatprep.subr.mxu0 0.0
  %1106 = vmatpush1.msra.mxu0 0.0
  %1107 = vmatprep.subr.mxu0 0.0
  %1108 = vmatpush1.msra.mxu0 0.0
  %1109 = vmatprep.subr.mxu0 0.0
  %1110 = vmatpush1.msra.mxu0 0.0
  %1111 = vmatprep.subr.mxu0 0.0
  %1112 = vmatpush1.msra.mxu0 0.0
  %1113 = vmatprep.subr.mxu0 0.0
  %1114 = vmatpush1.msra.mxu0 0.0
  %1115 = vmatprep.subr.mxu0 0.0
  %1116 = vmatpush1.msra.mxu0 0.0
  %1117 = vmatprep.subr.mxu0 0.0
  %1118 = vmatpush1.msra.mxu0 0.0
  %1119 = vmatprep.subr.mxu0 0.0
  %1120 = vmatpush1.msra.mxu0 0.0
  %1121 = vmatprep.subr.mxu0 0.0
  %1122 = vmatpush1.msra.mxu0 0.0
  %1123 = vmatprep.subr.mxu0 0.0
  %1124 = vmatpush1.msra.mxu0 0.0
  %1125 = vmatprep.subr.mxu0 0.0
  %1126 = vmatpush1.msra.mxu0 0.0
  %1127 = vmatprep.subr.mxu0 0.0
  %1128 = vmatpush1.msra.mxu0 0.0
  %1129 = vmatprep.subr.mxu0 0.0
  %1130 = vmatpush1.msra.mxu0 0.0
  %1131 = vmatprep.subr.mxu0 0.0
  %1132 = vmatpush1.msra.mxu0 0.0
  %1133 = vmatprep.subr.mxu0 0.0
  %1134 = vmatpush1.msra.mxu0 0.0
  %1135 = vmatprep.subr.mxu0 0.0
  %1136 = vmatpush1.msra.mxu0 0.0
  %1137 = vmatprep.subr.mxu0 0.0
  %1138 = vmatpush1.msra.mxu0 0.0
  %1139 = vmatprep.subr.mxu0 0.0
  %1140 = vmatpush1.msra.mxu0 0.0
  %1141 = vmatprep.subr.mxu0 0.0
  %1142 = vmatpush1.msra.mxu0 0.0
  %1143 = vmatprep.subr.mxu0 0.0
  %1144 = vmatpush1.msra.mxu0 0.0
  %1145 = vmatprep.subr.mxu0 0.0
  %1146 = vmatpush1.msra.mxu0 0.0
  %1147 = vmatprep.subr.mxu0 0.0
  %1148 = vmatpush1.msra.mxu0 0.0
  %1149 = vmatprep.subr.mxu0 0.0
  %1150 = vmatpush1.msra.mxu0 0.0
  %1151 = vmatprep.subr.mxu0 0.0
  %1152 = vmatpush1.msra.mxu0 0.0
  %1153 = vmatprep.subr.mxu0 0.0
  %1154 = vmatpush1.msra.mxu0 0.0
  %1155 = vmatprep.subr.mxu0 0.0
  %1156 = vmatpush1.msra.mxu0 0.0
  %1157 = vmatprep.subr.mxu0 0.0
  %1158 = vmatpush1.msra.mxu0 0.0
  %1159 = vmatprep.subr.mxu0 0.0
  %1160 = vmatpush1.msra.mxu0 0.0
  %1161 = vmatprep.mubr.f32.mxu0 0.0
  %1162 = vmatmul.mubr.f32.gmra.mrb[0].mxu0 %v1095
  %v1163 = vpop.f32.mrb[0].mxu0
  %v1164 = vadd.f32 0.0, %v1163
  %v1165 = vpop.f32.mrb[0].mxu0
  %1166 = vdwg.mxu0
  %v1168 = vsel %vm655, %v639, 0
  %1170 = vmatprep.subr.mxu0 0.0
  %1171 = vmatpush1.msra.mxu0 %v376
  %1172 = vmatprep.subr.mxu0 0.0
  %1173 = vmatpush1.msra.mxu0 0.0
  %1174 = vmatprep.subr.mxu0 0.0
  %1175 = vmatpush1.msra.mxu0 0.0
  %1176 = vmatprep.subr.mxu0 0.0
  %1177 = vmatpush1.msra.mxu0 0.0
  %1178 = vmatprep.subr.mxu0 0.0
  %1179 = vmatpush1.msra.mxu0 0.0
  %1180 = vmatprep.subr.mxu0 0.0
  %1181 = vmatpush1.msra.mxu0 0.0
  %1182 = vmatprep.subr.mxu0 0.0
  %1183 = vmatpush1.msra.mxu0 0.0
  %1184 = vmatprep.subr.mxu0 0.0
  %1185 = vmatpush1.msra.mxu0 0.0
  %1186 = vmatprep.subr.mxu0 0.0
  %1187 = vmatpush1.msra.mxu0 0.0
  %1188 = vmatprep.subr.mxu0 0.0
  %1189 = vmatpush1.msra.mxu0 0.0
  %1190 = vmatprep.subr.mxu0 0.0
  %1191 = vmatpush1.msra.mxu0 0.0
  %1192 = vmatprep.subr.mxu0 0.0
  %1193 = vmatpush1.msra.mxu0 0.0
  %1194 = vmatprep.subr.mxu0 0.0
  %1195 = vmatpush1.msra.mxu0 0.0
  %1196 = vmatprep.subr.mxu0 0.0
  %1197 = vmatpush1.msra.mxu0 0.0
  %1198 = vmatprep.subr.mxu0 0.0
  %1199 = vmatpush1.msra.mxu0 0.0
  %1200 = vmatprep.subr.mxu0 0.0
  %1201 = vmatpush1.msra.mxu0 0.0
  %1202 = vmatprep.subr.mxu0 0.0
  %1203 = vmatpush1.msra.mxu0 0.0
  %1204 = vmatprep.subr.mxu0 0.0
  %1205 = vmatpush1.msra.mxu0 0.0
  %1206 = vmatprep.subr.mxu0 0.0
  %1207 = vmatpush1.msra.mxu0 0.0
  %1208 = vmatprep.subr.mxu0 0.0
  %1209 = vmatpush1.msra.mxu0 0.0
  %1210 = vmatprep.subr.mxu0 0.0
  %1211 = vmatpush1.msra.mxu0 0.0
  %1212 = vmatprep.subr.mxu0 0.0
  %1213 = vmatpush1.msra.mxu0 0.0
  %1214 = vmatprep.subr.mxu0 0.0
  %1215 = vmatpush1.msra.mxu0 0.0
  %1216 = vmatprep.subr.mxu0 0.0
  %1217 = vmatpush1.msra.mxu0 0.0
  %1218 = vmatprep.subr.mxu0 0.0
  %1219 = vmatpush1.msra.mxu0 0.0
  %1220 = vmatprep.subr.mxu0 0.0
  %1221 = vmatpush1.msra.mxu0 0.0
  %1222 = vmatprep.subr.mxu0 0.0
  %1223 = vmatpush1.msra.mxu0 0.0
  %1224 = vmatprep.subr.mxu0 0.0
  %1225 = vmatpush1.msra.mxu0 0.0
  %1226 = vmatprep.subr.mxu0 0.0
  %1227 = vmatpush1.msra.mxu0 0.0
  %1228 = vmatprep.subr.mxu0 0.0
  %1229 = vmatpush1.msra.mxu0 0.0
  %1230 = vmatprep.subr.mxu0 0.0
  %1231 = vmatpush1.msra.mxu0 0.0
  %1232 = vmatprep.subr.mxu0 0.0
  %1233 = vmatpush1.msra.mxu0 0.0
  %1234 = vmatprep.mubr.f32.mxu0 0.0
  %1235 = vmatmul.mubr.f32.gmra.mrb[0].mxu0 %v1168
  %v1236 = vpop.f32.mrb[0].mxu0
  %v1237 = vadd.f32 0.0, %v1236
  %v1238 = vpop.f32.mrb[0].mxu0
  %1239 = vdwg.mxu0
  %v1240 = vsel %vm655, %v726, -inf
  %1241 = vmax.xlane.f32.xlu0 %v1240
  %v1242 = vpop.xlane.xlu0 %1241
  %v1243 = vsel %vm655, %v799, -inf
  %1244 = vmax.xlane.f32.xlu0 %v1243
  %v1245 = vpop.xlane.xlu0 %1244
  %v1246 = vsel %vm655, %v872, -inf
  %1247 = vmax.xlane.f32.xlu0 %v1246
  %v1248 = vpop.xlane.xlu0 %1247
  %v1249 = vsel %vm655, %v945, -inf
  %1250 = vmax.xlane.f32.xlu0 %v1249
  %v1251 = vpop.xlane.xlu0 %1250
  %v1252 = vsel %vm655, %v1018, -inf
  %1253 = vmax.xlane.f32.xlu0 %v1252
  %v1254 = vpop.xlane.xlu0 %1253
  %v1255 = vsel %vm655, %v1091, -inf
  %1256 = vmax.xlane.f32.xlu0 %v1255
  %v1257 = vpop.xlane.xlu0 %1256
  %v1258 = vsel %vm655, %v1164, -inf
  %1259 = vmax.xlane.f32.xlu0 %v1258
  %v1260 = vpop.xlane.xlu0 %1259
  %v1261 = vsel %vm655, %v1237, -inf
  %1262 = vmax.xlane.f32.xlu0 %v1261
  %v1263 = vpop.xlane.xlu0 %1262
  %v1264 = vsub.f32 %v726, %v1242
  %v1265 = vsub.f32 %v799, %v1245
  %v1266 = vsub.f32 %v872, %v1248
  %v1267 = vsub.f32 %v945, %v1251
  %v1268 = vsub.f32 %v1018, %v1254
  %v1269 = vsub.f32 %v1091, %v1257
  %v1270 = vsub.f32 %v1164, %v1260
  %v1271 = vsub.f32 %v1237, %v1263
  %v1272 = vmul.f32 %v1264, 1.442695
  %v1273 = vpow.pop %v1272
  %v1274 = vmul.f32 %v1265, 1.442695
  %v1275 = vpow.pop %v1274
  %v1276 = vmul.f32 %v1266, 1.442695
  %v1277 = vpow.pop %v1276
  %v1278 = vmul.f32 %v1267, 1.442695
  %v1279 = vpow.pop %v1278
  %v1280 = vmul.f32 %v1268, 1.442695
  %v1281 = vpow.pop %v1280
  %v1282 = vmul.f32 %v1269, 1.442695
  %v1283 = vpow.pop %v1282
  %v1284 = vmul.f32 %v1270, 1.442695
  %v1285 = vpow.pop %v1284
  %v1286 = vmul.f32 %v1271, 1.442695
  %v1287 = vpow.pop %v1286
  %v1288 = vsel %vm655, %v1273, 0.0
  %1289 = vadd.xlane.f32.xlu0 %v1288
  %v1290 = vpop.xlane.xlu0 %1289
  %v1291 = vsel %vm655, %v1275, 0.0
  %1292 = vadd.xlane.f32.xlu0 %v1291
  %v1293 = vpop.xlane.xlu0 %1292
  %v1294 = vsel %vm655, %v1277, 0.0
  %1295 = vadd.xlane.f32.xlu0 %v1294
  %v1296 = vpop.xlane.xlu0 %1295
  %v1297 = vsel %vm655, %v1279, 0.0
  %1298 = vadd.xlane.f32.xlu0 %v1297
  %v1299 = vpop.xlane.xlu0 %1298
  %v1300 = vsel %vm655, %v1281, 0.0
  %1301 = vadd.xlane.f32.xlu0 %v1300
  %v1302 = vpop.xlane.xlu0 %1301
  %v1303 = vsel %vm655, %v1283, 0.0
  %1304 = vadd.xlane.f32.xlu0 %v1303
  %v1305 = vpop.xlane.xlu0 %1304
  %v1306 = vsel %vm655, %v1285, 0.0
  %1307 = vadd.xlane.f32.xlu0 %v1306
  %v1308 = vpop.xlane.xlu0 %1307
  %v1309 = vsel %vm655, %v1287, 0.0
  %1310 = vadd.xlane.f32.xlu0 %v1309
  %v1311 = vpop.xlane.xlu0 %1310
  %v1312 = vrcp.pop %v1290
  %v1313 = vrcp.pop %v1293
  %v1314 = vrcp.pop %v1296
  %v1315 = vrcp.pop %v1299
  %v1316 = vrcp.pop %v1302
  %v1317 = vrcp.pop %v1305
  %v1318 = vrcp.pop %v1308
  %v1319 = vrcp.pop %v1311
  %v1320 = vmul.f32 %v1273, %v1312
  %v1321 = vmul.f32 %v1275, %v1313
  %v1322 = vmul.f32 %v1277, %v1314
  %v1323 = vmul.f32 %v1279, %v1315
  %v1324 = vmul.f32 %v1281, %v1316
  %v1325 = vmul.f32 %v1283, %v1317
  %v1326 = vmul.f32 %v1285, %v1318
  %v1327 = vmul.f32 %v1287, %v1319
  %v1329 = vsel %vm655, %v256, 0
  %v1332 = vsel %vm655, %v1320, 0
  %1334 = vmatprep.subr.mxu0 0.0
  %1335 = vmatpush1.xpose.msra.mxu0 %v1332
  %1336 = vmatprep.subr.mxu0 0.0
  %1337 = vmatpush1.xpose.msra.mxu0 0.0
  %1338 = vmatprep.subr.mxu0 0.0
  %1339 = vmatpush1.xpose.msra.mxu0 0.0
  %1340 = vmatprep.subr.mxu0 0.0
  %1341 = vmatpush1.xpose.msra.mxu0 0.0
  %1342 = vmatprep.subr.mxu0 0.0
  %1343 = vmatpush1.xpose.msra.mxu0 0.0
  %1344 = vmatprep.subr.mxu0 0.0
  %1345 = vmatpush1.xpose.msra.mxu0 0.0
  %1346 = vmatprep.subr.mxu0 0.0
  %1347 = vmatpush1.xpose.msra.mxu0 0.0
  %1348 = vmatprep.subr.mxu0 0.0
  %1349 = vmatpush1.xpose.msra.mxu0 0.0
  %1350 = vmatprep.subr.mxu0 0.0
  %1351 = vmatpush1.xpose.msra.mxu0 0.0
  %1352 = vmatprep.subr.mxu0 0.0
  %1353 = vmatpush1.xpose.msra.mxu0 0.0
  %1354 = vmatprep.subr.mxu0 0.0
  %1355 = vmatpush1.xpose.msra.mxu0 0.0
  %1356 = vmatprep.subr.mxu0 0.0
  %1357 = vmatpush1.xpose.msra.mxu0 0.0
  %1358 = vmatprep.subr.mxu0 0.0
  %1359 = vmatpush1.xpose.msra.mxu0 0.0
  %1360 = vmatprep.subr.mxu0 0.0
  %1361 = vmatpush1.xpose.msra.mxu0 0.0
  %1362 = vmatprep.subr.mxu0 0.0
  %1363 = vmatpush1.xpose.msra.mxu0 0.0
  %1364 = vmatprep.subr.mxu0 0.0
  %1365 = vmatpush1.xpose.msra.mxu0 0.0
  %1366 = vmatprep.subr.mxu0 0.0
  %1367 = vmatpush1.xpose.msra.mxu0 0.0
  %1368 = vmatprep.subr.mxu0 0.0
  %1369 = vmatpush1.xpose.msra.mxu0 0.0
  %1370 = vmatprep.subr.mxu0 0.0
  %1371 = vmatpush1.xpose.msra.mxu0 0.0
  %1372 = vmatprep.subr.mxu0 0.0
  %1373 = vmatpush1.xpose.msra.mxu0 0.0
  %1374 = vmatprep.subr.mxu0 0.0
  %1375 = vmatpush1.xpose.msra.mxu0 0.0
  %1376 = vmatprep.subr.mxu0 0.0
  %1377 = vmatpush1.xpose.msra.mxu0 0.0
  %1378 = vmatprep.subr.mxu0 0.0
  %1379 = vmatpush1.xpose.msra.mxu0 0.0
  %1380 = vmatprep.subr.mxu0 0.0
  %1381 = vmatpush1.xpose.msra.mxu0 0.0
  %1382 = vmatprep.subr.mxu0 0.0
  %1383 = vmatpush1.xpose.msra.mxu0 0.0
  %1384 = vmatprep.subr.mxu0 0.0
  %1385 = vmatpush1.xpose.msra.mxu0 0.0
  %1386 = vmatprep.subr.mxu0 0.0
  %1387 = vmatpush1.xpose.msra.mxu0 0.0
  %1388 = vmatprep.subr.mxu0 0.0
  %1389 = vmatpush1.xpose.msra.mxu0 0.0
  %1390 = vmatprep.subr.mxu0 0.0
  %1391 = vmatpush1.xpose.msra.mxu0 0.0
  %1392 = vmatprep.subr.mxu0 0.0
  %1393 = vmatpush1.xpose.msra.mxu0 0.0
  %1394 = vmatprep.subr.mxu0 0.0
  %1395 = vmatpush1.xpose.msra.mxu0 0.0
  %1396 = vmatprep.subr.mxu0 0.0
  %1397 = vmatpush1.xpose.msra.mxu0 0.0
  %1398 = vmatprep.mubr.f32.mxu0 0.0
  %1399 = vmatmul.mubr.f32.gmra.mrb[0].mxu0 %v1329
  %v1400 = vpop.f32.mrb[0].mxu0
  %v1401 = vadd.f32 0.0, %v1400
  %v1402 = vpop.f32.mrb[0].mxu0
  %1403 = vdwg.mxu0
  %v1405 = vsel %vm655, %v261, 0
  %v1408 = vsel %vm655, %v1321, 0
  %1410 = vmatprep.subr.mxu0 0.0
  %1411 = vmatpush1.xpose.msra.mxu0 %v1408
  %1412 = vmatprep.subr.mxu0 0.0
  %1413 = vmatpush1.xpose.msra.mxu0 0.0
  %1414 = vmatprep.subr.mxu0 0.0
  %1415 = vmatpush1.xpose.msra.mxu0 0.0
  %1416 = vmatprep.subr.mxu0 0.0
  %1417 = vmatpush1.xpose.msra.mxu0 0.0
  %1418 = vmatprep.subr.mxu0 0.0
  %1419 = vmatpush1.xpose.msra.mxu0 0.0
  %1420 = vmatprep.subr.mxu0 0.0
  %1421 = vmatpush1.xpose.msra.mxu0 0.0
  %1422 = vmatprep.subr.mxu0 0.0
  %1423 = vmatpush1.xpose.msra.mxu0 0.0
  %1424 = vmatprep.subr.mxu0 0.0
  %1425 = vmatpush1.xpose.msra.mxu0 0.0
  %1426 = vmatprep.subr.mxu0 0.0
  %1427 = vmatpush1.xpose.msra.mxu0 0.0
  %1428 = vmatprep.subr.mxu0 0.0
  %1429 = vmatpush1.xpose.msra.mxu0 0.0
  %1430 = vmatprep.subr.mxu0 0.0
  %1431 = vmatpush1.xpose.msra.mxu0 0.0
  %1432 = vmatprep.subr.mxu0 0.0
  %1433 = vmatpush1.xpose.msra.mxu0 0.0
  %1434 = vmatprep.subr.mxu0 0.0
  %1435 = vmatpush1.xpose.msra.mxu0 0.0
  %1436 = vmatprep.subr.mxu0 0.0
  %1437 = vmatpush1.xpose.msra.mxu0 0.0
  %1438 = vmatprep.subr.mxu0 0.0
  %1439 = vmatpush1.xpose.msra.mxu0 0.0
  %1440 = vmatprep.subr.mxu0 0.0
  %1441 = vmatpush1.xpose.msra.mxu0 0.0
  %1442 = vmatprep.subr.mxu0 0.0
  %1443 = vmatpush1.xpose.msra.mxu0 0.0
  %1444 = vmatprep.subr.mxu0 0.0
  %1445 = vmatpush1.xpose.msra.mxu0 0.0
  %1446 = vmatprep.subr.mxu0 0.0
  %1447 = vmatpush1.xpose.msra.mxu0 0.0
  %1448 = vmatprep.subr.mxu0 0.0
  %1449 = vmatpush1.xpose.msra.mxu0 0.0
  %1450 = vmatprep.subr.mxu0 0.0
  %1451 = vmatpush1.xpose.msra.mxu0 0.0
  %1452 = vmatprep.subr.mxu0 0.0
  %1453 = vmatpush1.xpose.msra.mxu0 0.0
  %1454 = vmatprep.subr.mxu0 0.0
  %1455 = vmatpush1.xpose.msra.mxu0 0.0
  %1456 = vmatprep.subr.mxu0 0.0
  %1457 = vmatpush1.xpose.msra.mxu0 0.0
  %1458 = vmatprep.subr.mxu0 0.0
  %1459 = vmatpush1.xpose.msra.mxu0 0.0
  %1460 = vmatprep.subr.mxu0 0.0
  %1461 = vmatpush1.xpose.msra.mxu0 0.0
  %1462 = vmatprep.subr.mxu0 0.0
  %1463 = vmatpush1.xpose.msra.mxu0 0.0
  %1464 = vmatprep.subr.mxu0 0.0
  %1465 = vmatpush1.xpose.msra.mxu0 0.0
  %1466 = vmatprep.subr.mxu0 0.0
  %1467 = vmatpush1.xpose.msra.mxu0 0.0
  %1468 = vmatprep.subr.mxu0 0.0
  %1469 = vmatpush1.xpose.msra.mxu0 0.0
  %1470 = vmatprep.subr.mxu0 0.0
  %1471 = vmatpush1.xpose.msra.mxu0 0.0
  %1472 = vmatprep.subr.mxu0 0.0
  %1473 = vmatpush1.xpose.msra.mxu0 0.0
  %1474 = vmatprep.mubr.f32.mxu0 0.0
  %1475 = vmatmul.mubr.f32.gmra.mrb[0].mxu0 %v1405
  %v1476 = vpop.f32.mrb[0].mxu0
  %v1477 = vadd.f32 0.0, %v1476
  %v1478 = vpop.f32.mrb[0].mxu0
  %1479 = vdwg.mxu0
  %v1481 = vsel %vm655, %v266, 0
  %v1484 = vsel %vm655, %v1322, 0
  %1486 = vmatprep.subr.mxu0 0.0
  %1487 = vmatpush1.xpose.msra.mxu0 %v1484
  %1488 = vmatprep.subr.mxu0 0.0
  %1489 = vmatpush1.xpose.msra.mxu0 0.0
  %1490 = vmatprep.subr.mxu0 0.0
  %1491 = vmatpush1.xpose.msra.mxu0 0.0
  %1492 = vmatprep.subr.mxu0 0.0
  %1493 = vmatpush1.xpose.msra.mxu0 0.0
  %1494 = vmatprep.subr.mxu0 0.0
  %1495 = vmatpush1.xpose.msra.mxu0 0.0
  %1496 = vmatprep.subr.mxu0 0.0
  %1497 = vmatpush1.xpose.msra.mxu0 0.0
  %1498 = vmatprep.subr.mxu0 0.0
  %1499 = vmatpush1.xpose.msra.mxu0 0.0
  %1500 = vmatprep.subr.mxu0 0.0
  %1501 = vmatpush1.xpose.msra.mxu0 0.0
  %1502 = vmatprep.subr.mxu0 0.0
  %1503 = vmatpush1.xpose.msra.mxu0 0.0
  %1504 = vmatprep.subr.mxu0 0.0
  %1505 = vmatpush1.xpose.msra.mxu0 0.0
  %1506 = vmatprep.subr.mxu0 0.0
  %1507 = vmatpush1.xpose.msra.mxu0 0.0
  %1508 = vmatprep.subr.mxu0 0.0
  %1509 = vmatpush1.xpose.msra.mxu0 0.0
  %1510 = vmatprep.subr.mxu0 0.0
  %1511 = vmatpush1.xpose.msra.mxu0 0.0
  %1512 = vmatprep.subr.mxu0 0.0
  %1513 = vmatpush1.xpose.msra.mxu0 0.0
  %1514 = vmatprep.subr.mxu0 0.0
  %1515 = vmatpush1.xpose.msra.mxu0 0.0
  %1516 = vmatprep.subr.mxu0 0.0
  %1517 = vmatpush1.xpose.msra.mxu0 0.0
  %1518 = vmatprep.subr.mxu0 0.0
  %1519 = vmatpush1.xpose.msra.mxu0 0.0
  %1520 = vmatprep.subr.mxu0 0.0
  %1521 = vmatpush1.xpose.msra.mxu0 0.0
  %1522 = vmatprep.subr.mxu0 0.0
  %1523 = vmatpush1.xpose.msra.mxu0 0.0
  %1524 = vmatprep.subr.mxu0 0.0
  %1525 = vmatpush1.xpose.msra.mxu0 0.0
  %1526 = vmatprep.subr.mxu0 0.0
  %1527 = vmatpush1.xpose.msra.mxu0 0.0
  %1528 = vmatprep.subr.mxu0 0.0
  %1529 = vmatpush1.xpose.msra.mxu0 0.0
  %1530 = vmatprep.subr.mxu0 0.0
  %1531 = vmatpush1.xpose.msra.mxu0 0.0
  %1532 = vmatprep.subr.mxu0 0.0
  %1533 = vmatpush1.xpose.msra.mxu0 0.0
  %1534 = vmatprep.subr.mxu0 0.0
  %1535 = vmatpush1.xpose.msra.mxu0 0.0
  %1536 = vmatprep.subr.mxu0 0.0
  %1537 = vmatpush1.xpose.msra.mxu0 0.0
  %1538 = vmatprep.subr.mxu0 0.0
  %1539 = vmatpush1.xpose.msra.mxu0 0.0
  %1540 = vmatprep.subr.mxu0 0.0
  %1541 = vmatpush1.xpose.msra.mxu0 0.0
  %1542 = vmatprep.subr.mxu0 0.0
  %1543 = vmatpush1.xpose.msra.mxu0 0.0
  %1544 = vmatprep.subr.mxu0 0.0
  %1545 = vmatpush1.xpose.msra.mxu0 0.0
  %1546 = vmatprep.subr.mxu0 0.0
  %1547 = vmatpush1.xpose.msra.mxu0 0.0
  %1548 = vmatprep.subr.mxu0 0.0
  %1549 = vmatpush1.xpose.msra.mxu0 0.0
  %1550 = vmatprep.mubr.f32.mxu0 0.0
  %1551 = vmatmul.mubr.f32.gmra.mrb[0].mxu0 %v1481
  %v1552 = vpop.f32.mrb[0].mxu0
  %v1553 = vadd.f32 0.0, %v1552
  %v1554 = vpop.f32.mrb[0].mxu0
  %1555 = vdwg.mxu0
  %v1557 = vsel %vm655, %v271, 0
  %v1560 = vsel %vm655, %v1323, 0
  %1562 = vmatprep.subr.mxu0 0.0
  %1563 = vmatpush1.xpose.msra.mxu0 %v1560
  %1564 = vmatprep.subr.mxu0 0.0
  %1565 = vmatpush1.xpose.msra.mxu0 0.0
  %1566 = vmatprep.subr.mxu0 0.0
  %1567 = vmatpush1.xpose.msra.mxu0 0.0
  %1568 = vmatprep.subr.mxu0 0.0
  %1569 = vmatpush1.xpose.msra.mxu0 0.0
  %1570 = vmatprep.subr.mxu0 0.0
  %1571 = vmatpush1.xpose.msra.mxu0 0.0
  %1572 = vmatprep.subr.mxu0 0.0
  %1573 = vmatpush1.xpose.msra.mxu0 0.0
  %1574 = vmatprep.subr.mxu0 0.0
  %1575 = vmatpush1.xpose.msra.mxu0 0.0
  %1576 = vmatprep.subr.mxu0 0.0
  %1577 = vmatpush1.xpose.msra.mxu0 0.0
  %1578 = vmatprep.subr.mxu0 0.0
  %1579 = vmatpush1.xpose.msra.mxu0 0.0
  %1580 = vmatprep.subr.mxu0 0.0
  %1581 = vmatpush1.xpose.msra.mxu0 0.0
  %1582 = vmatprep.subr.mxu0 0.0
  %1583 = vmatpush1.xpose.msra.mxu0 0.0
  %1584 = vmatprep.subr.mxu0 0.0
  %1585 = vmatpush1.xpose.msra.mxu0 0.0
  %1586 = vmatprep.subr.mxu0 0.0
  %1587 = vmatpush1.xpose.msra.mxu0 0.0
  %1588 = vmatprep.subr.mxu0 0.0
  %1589 = vmatpush1.xpose.msra.mxu0 0.0
  %1590 = vmatprep.subr.mxu0 0.0
  %1591 = vmatpush1.xpose.msra.mxu0 0.0
  %1592 = vmatprep.subr.mxu0 0.0
  %1593 = vmatpush1.xpose.msra.mxu0 0.0
  %1594 = vmatprep.subr.mxu0 0.0
  %1595 = vmatpush1.xpose.msra.mxu0 0.0
  %1596 = vmatprep.subr.mxu0 0.0
  %1597 = vmatpush1.xpose.msra.mxu0 0.0
  %1598 = vmatprep.subr.mxu0 0.0
  %1599 = vmatpush1.xpose.msra.mxu0 0.0
  %1600 = vmatprep.subr.mxu0 0.0
  %1601 = vmatpush1.xpose.msra.mxu0 0.0
  %1602 = vmatprep.subr.mxu0 0.0
  %1603 = vmatpush1.xpose.msra.mxu0 0.0
  %1604 = vmatprep.subr.mxu0 0.0
  %1605 = vmatpush1.xpose.msra.mxu0 0.0
  %1606 = vmatprep.subr.mxu0 0.0
  %1607 = vmatpush1.xpose.msra.mxu0 0.0
  %1608 = vmatprep.subr.mxu0 0.0
  %1609 = vmatpush1.xpose.msra.mxu0 0.0
  %1610 = vmatprep.subr.mxu0 0.0
  %1611 = vmatpush1.xpose.msra.mxu0 0.0
  %1612 = vmatprep.subr.mxu0 0.0
  %1613 = vmatpush1.xpose.msra.mxu0 0.0
  %1614 = vmatprep.subr.mxu0 0.0
  %1615 = vmatpush1.xpose.msra.mxu0 0.0
  %1616 = vmatprep.subr.mxu0 0.0
  %1617 = vmatpush1.xpose.msra.mxu0 0.0
  %1618 = vmatprep.subr.mxu0 0.0
  %1619 = vmatpush1.xpose.msra.mxu0 0.0
  %1620 = vmatprep.subr.mxu0 0.0
  %1621 = vmatpush1.xpose.msra.mxu0 0.0
  %1622 = vmatprep.subr.mxu0 0.0
  %1623 = vmatpush1.xpose.msra.mxu0 0.0
  %1624 = vmatprep.subr.mxu0 0.0
  %1625 = vmatpush1.xpose.msra.mxu0 0.0
  %1626 = vmatprep.mubr.f32.mxu0 0.0
  %1627 = vmatmul.mubr.f32.gmra.mrb[0].mxu0 %v1557
  %v1628 = vpop.f32.mrb[0].mxu0
  %v1629 = vadd.f32 0.0, %v1628
  %v1630 = vpop.f32.mrb[0].mxu0
  %1631 = vdwg.mxu0
  %v1633 = vsel %vm655, %v381, 0
  %v1636 = vsel %vm655, %v1324, 0
  %1638 = vmatprep.subr.mxu0 0.0
  %1639 = vmatpush1.xpose.msra.mxu0 %v1636
  %1640 = vmatprep.subr.mxu0 0.0
  %1641 = vmatpush1.xpose.msra.mxu0 0.0
  %1642 = vmatprep.subr.mxu0 0.0
  %1643 = vmatpush1.xpose.msra.mxu0 0.0
  %1644 = vmatprep.subr.mxu0 0.0
  %1645 = vmatpush1.xpose.msra.mxu0 0.0
  %1646 = vmatprep.subr.mxu0 0.0
  %1647 = vmatpush1.xpose.msra.mxu0 0.0
  %1648 = vmatprep.subr.mxu0 0.0
  %1649 = vmatpush1.xpose.msra.mxu0 0.0
  %1650 = vmatprep.subr.mxu0 0.0
  %1651 = vmatpush1.xpose.msra.mxu0 0.0
  %1652 = vmatprep.subr.mxu0 0.0
  %1653 = vmatpush1.xpose.msra.mxu0 0.0
  %1654 = vmatprep.subr.mxu0 0.0
  %1655 = vmatpush1.xpose.msra.mxu0 0.0
  %1656 = vmatprep.subr.mxu0 0.0
  %1657 = vmatpush1.xpose.msra.mxu0 0.0
  %1658 = vmatprep.subr.mxu0 0.0
  %1659 = vmatpush1.xpose.msra.mxu0 0.0
  %1660 = vmatprep.subr.mxu0 0.0
  %1661 = vmatpush1.xpose.msra.mxu0 0.0
  %1662 = vmatprep.subr.mxu0 0.0
  %1663 = vmatpush1.xpose.msra.mxu0 0.0
  %1664 = vmatprep.subr.mxu0 0.0
  %1665 = vmatpush1.xpose.msra.mxu0 0.0
  %1666 = vmatprep.subr.mxu0 0.0
  %1667 = vmatpush1.xpose.msra.mxu0 0.0
  %1668 = vmatprep.subr.mxu0 0.0
  %1669 = vmatpush1.xpose.msra.mxu0 0.0
  %1670 = vmatprep.subr.mxu0 0.0
  %1671 = vmatpush1.xpose.msra.mxu0 0.0
  %1672 = vmatprep.subr.mxu0 0.0
  %1673 = vmatpush1.xpose.msra.mxu0 0.0
  %1674 = vmatprep.subr.mxu0 0.0
  %1675 = vmatpush1.xpose.msra.mxu0 0.0
  %1676 = vmatprep.subr.mxu0 0.0
  %1677 = vmatpush1.xpose.msra.mxu0 0.0
  %1678 = vmatprep.subr.mxu0 0.0
  %1679 = vmatpush1.xpose.msra.mxu0 0.0
  %1680 = vmatprep.subr.mxu0 0.0
  %1681 = vmatpush1.xpose.msra.mxu0 0.0
  %1682 = vmatprep.subr.mxu0 0.0
  %1683 = vmatpush1.xpose.msra.mxu0 0.0
  %1684 = vmatprep.subr.mxu0 0.0
  %1685 = vmatpush1.xpose.msra.mxu0 0.0
  %1686 = vmatprep.subr.mxu0 0.0
  %1687 = vmatpush1.xpose.msra.mxu0 0.0
  %1688 = vmatprep.subr.mxu0 0.0
  %1689 = vmatpush1.xpose.msra.mxu0 0.0
  %1690 = vmatprep.subr.mxu0 0.0
  %1691 = vmatpush1.xpose.msra.mxu0 0.0
  %1692 = vmatprep.subr.mxu0 0.0
  %1693 = vmatpush1.xpose.msra.mxu0 0.0
  %1694 = vmatprep.subr.mxu0 0.0
  %1695 = vmatpush1.xpose.msra.mxu0 0.0
  %1696 = vmatprep.subr.mxu0 0.0
  %1697 = vmatpush1.xpose.msra.mxu0 0.0
  %1698 = vmatprep.subr.mxu0 0.0
  %1699 = vmatpush1.xpose.msra.mxu0 0.0
  %1700 = vmatprep.subr.mxu0 0.0
  %1701 = vmatpush1.xpose.msra.mxu0 0.0
  %1702 = vmatprep.mubr.f32.mxu0 0.0
  %1703 = vmatmul.mubr.f32.gmra.mrb[0].mxu0 %v1633
  %v1704 = vpop.f32.mrb[0].mxu0
  %v1705 = vadd.f32 0.0, %v1704
  %v1706 = vpop.f32.mrb[0].mxu0
  %1707 = vdwg.mxu0
  %v1709 = vsel %vm655, %v386, 0
  %v1712 = vsel %vm655, %v1325, 0
  %1714 = vmatprep.subr.mxu0 0.0
  %1715 = vmatpush1.xpose.msra.mxu0 %v1712
  %1716 = vmatprep.subr.mxu0 0.0
  %1717 = vmatpush1.xpose.msra.mxu0 0.0
  %1718 = vmatprep.subr.mxu0 0.0
  %1719 = vmatpush1.xpose.msra.mxu0 0.0
  %1720 = vmatprep.subr.mxu0 0.0
  %1721 = vmatpush1.xpose.msra.mxu0 0.0
  %1722 = vmatprep.subr.mxu0 0.0
  %1723 = vmatpush1.xpose.msra.mxu0 0.0
  %1724 = vmatprep.subr.mxu0 0.0
  %1725 = vmatpush1.xpose.msra.mxu0 0.0
  %1726 = vmatprep.subr.mxu0 0.0
  %1727 = vmatpush1.xpose.msra.mxu0 0.0
  %1728 = vmatprep.subr.mxu0 0.0
  %1729 = vmatpush1.xpose.msra.mxu0 0.0
  %1730 = vmatprep.subr.mxu0 0.0
  %1731 = vmatpush1.xpose.msra.mxu0 0.0
  %1732 = vmatprep.subr.mxu0 0.0
  %1733 = vmatpush1.xpose.msra.mxu0 0.0
  %1734 = vmatprep.subr.mxu0 0.0
  %1735 = vmatpush1.xpose.msra.mxu0 0.0
  %1736 = vmatprep.subr.mxu0 0.0
  %1737 = vmatpush1.xpose.msra.mxu0 0.0
  %1738 = vmatprep.subr.mxu0 0.0
  %1739 = vmatpush1.xpose.msra.mxu0 0.0
  %1740 = vmatprep.subr.mxu0 0.0
  %1741 = vmatpush1.xpose.msra.mxu0 0.0
  %1742 = vmatprep.subr.mxu0 0.0
  %1743 = vmatpush1.xpose.msra.mxu0 0.0
  %1744 = vmatprep.subr.mxu0 0.0
  %1745 = vmatpush1.xpose.msra.mxu0 0.0
  %1746 = vmatprep.subr.mxu0 0.0
  %1747 = vmatpush1.xpose.msra.mxu0 0.0
  %1748 = vmatprep.subr.mxu0 0.0
  %1749 = vmatpush1.xpose.msra.mxu0 0.0
  %1750 = vmatprep.subr.mxu0 0.0
  %1751 = vmatpush1.xpose.msra.mxu0 0.0
  %1752 = vmatprep.subr.mxu0 0.0
  %1753 = vmatpush1.xpose.msra.mxu0 0.0
  %1754 = vmatprep.subr.mxu0 0.0
  %1755 = vmatpush1.xpose.msra.mxu0 0.0
  %1756 = vmatprep.subr.mxu0 0.0
  %1757 = vmatpush1.xpose.msra.mxu0 0.0
  %1758 = vmatprep.subr.mxu0 0.0
  %1759 = vmatpush1.xpose.msra.mxu0 0.0
  %1760 = vmatprep.subr.mxu0 0.0
  %1761 = vmatpush1.xpose.msra.mxu0 0.0
  %1762 = vmatprep.subr.mxu0 0.0
  %1763 = vmatpush1.xpose.msra.mxu0 0.0
  %1764 = vmatprep.subr.mxu0 0.0
  %1765 = vmatpush1.xpose.msra.mxu0 0.0
  %1766 = vmatprep.subr.mxu0 0.0
  %1767 = vmatpush1.xpose.msra.mxu0 0.0
  %1768 = vmatprep.subr.mxu0 0.0
  %1769 = vmatpush1.xpose.msra.mxu0 0.0
  %1770 = vmatprep.subr.mxu0 0.0
  %1771 = vmatpush1.xpose.msra.mxu0 0.0
  %1772 = vmatprep.subr.mxu0 0.0
  %1773 = vmatpush1.xpose.msra.mxu0 0.0
  %1774 = vmatprep.subr.mxu0 0.0
  %1775 = vmatpush1.xpose.msra.mxu0 0.0
  %1776 = vmatprep.subr.mxu0 0.0
  %1777 = vmatpush1.xpose.msra.mxu0 0.0
  %1778 = vmatprep.mubr.f32.mxu0 0.0
  %1779 = vmatmul.mubr.f32.gmra.mrb[0].mxu0 %v1709
  %v1780 = vpop.f32.mrb[0].mxu0
  %v1781 = vadd.f32 0.0, %v1780
  %v1782 = vpop.f32.mrb[0].mxu0
  %1783 = vdwg.mxu0
  %v1785 = vsel %vm655, %v391, 0
  %v1788 = vsel %vm655, %v1326, 0
  %1790 = vmatprep.subr.mxu0 0.0
  %1791 = vmatpush1.xpose.msra.mxu0 %v1788
  %1792 = vmatprep.subr.mxu0 0.0
  %1793 = vmatpush1.xpose.msra.mxu0 0.0
  %1794 = vmatprep.subr.mxu0 0.0
  %1795 = vmatpush1.xpose.msra.mxu0 0.0
  %1796 = vmatprep.subr.mxu0 0.0
  %1797 = vmatpush1.xpose.msra.mxu0 0.0
  %1798 = vmatprep.subr.mxu0 0.0
  %1799 = vmatpush1.xpose.msra.mxu0 0.0
  %1800 = vmatprep.subr.mxu0 0.0
  %1801 = vmatpush1.xpose.msra.mxu0 0.0
  %1802 = vmatprep.subr.mxu0 0.0
  %1803 = vmatpush1.xpose.msra.mxu0 0.0
  %1804 = vmatprep.subr.mxu0 0.0
  %1805 = vmatpush1.xpose.msra.mxu0 0.0
  %1806 = vmatprep.subr.mxu0 0.0
  %1807 = vmatpush1.xpose.msra.mxu0 0.0
  %1808 = vmatprep.subr.mxu0 0.0
  %1809 = vmatpush1.xpose.msra.mxu0 0.0
  %1810 = vmatprep.subr.mxu0 0.0
  %1811 = vmatpush1.xpose.msra.mxu0 0.0
  %1812 = vmatprep.subr.mxu0 0.0
  %1813 = vmatpush1.xpose.msra.mxu0 0.0
  %1814 = vmatprep.subr.mxu0 0.0
  %1815 = vmatpush1.xpose.msra.mxu0 0.0
  %1816 = vmatprep.subr.mxu0 0.0
  %1817 = vmatpush1.xpose.msra.mxu0 0.0
  %1818 = vmatprep.subr.mxu0 0.0
  %1819 = vmatpush1.xpose.msra.mxu0 0.0
  %1820 = vmatprep.subr.mxu0 0.0
  %1821 = vmatpush1.xpose.msra.mxu0 0.0
  %1822 = vmatprep.subr.mxu0 0.0
  %1823 = vmatpush1.xpose.msra.mxu0 0.0
  %1824 = vmatprep.subr.mxu0 0.0
  %1825 = vmatpush1.xpose.msra.mxu0 0.0
  %1826 = vmatprep.subr.mxu0 0.0
  %1827 = vmatpush1.xpose.msra.mxu0 0.0
  %1828 = vmatprep.subr.mxu0 0.0
  %1829 = vmatpush1.xpose.msra.mxu0 0.0
  %1830 = vmatprep.subr.mxu0 0.0
  %1831 = vmatpush1.xpose.msra.mxu0 0.0
  %1832 = vmatprep.subr.mxu0 0.0
  %1833 = vmatpush1.xpose.msra.mxu0 0.0
  %1834 = vmatprep.subr.mxu0 0.0
  %1835 = vmatpush1.xpose.msra.mxu0 0.0
  %1836 = vmatprep.subr.mxu0 0.0
  %1837 = vmatpush1.xpose.msra.mxu0 0.0
  %1838 = vmatprep.subr.mxu0 0.0
  %1839 = vmatpush1.xpose.msra.mxu0 0.0
  %1840 = vmatprep.subr.mxu0 0.0
  %1841 = vmatpush1.xpose.msra.mxu0 0.0
  %1842 = vmatprep.subr.mxu0 0.0
  %1843 = vmatpush1.xpose.msra.mxu0 0.0
  %1844 = vmatprep.subr.mxu0 0.0
  %1845 = vmatpush1.xpose.msra.mxu0 0.0
  %1846 = vmatprep.subr.mxu0 0.0
  %1847 = vmatpush1.xpose.msra.mxu0 0.0
  %1848 = vmatprep.subr.mxu0 0.0
  %1849 = vmatpush1.xpose.msra.mxu0 0.0
  %1850 = vmatprep.subr.mxu0 0.0
  %1851 = vmatpush1.xpose.msra.mxu0 0.0
  %1852 = vmatprep.subr.mxu0 0.0
  %1853 = vmatpush1.xpose.msra.mxu0 0.0
  %1854 = vmatprep.mubr.f32.mxu0 0.0
  %1855 = vmatmul.mubr.f32.gmra.mrb[0].mxu0 %v1785
  %v1856 = vpop.f32.mrb[0].mxu0
  %v1857 = vadd.f32 0.0, %v1856
  %v1858 = vpop.f32.mrb[0].mxu0
  %1859 = vdwg.mxu0
  %v1861 = vsel %vm655, %v396, 0
  %v1864 = vsel %vm655, %v1327, 0
  %1866 = vmatprep.subr.mxu0 0.0
  %1867 = vmatpush1.xpose.msra.mxu0 %v1864
  %1868 = vmatprep.subr.mxu0 0.0
  %1869 = vmatpush1.xpose.msra.mxu0 0.0
  %1870 = vmatprep.subr.mxu0 0.0
  %1871 = vmatpush1.xpose.msra.mxu0 0.0
  %1872 = vmatprep.subr.mxu0 0.0
  %1873 = vmatpush1.xpose.msra.mxu0 0.0
  %1874 = vmatprep.subr.mxu0 0.0
  %1875 = vmatpush1.xpose.msra.mxu0 0.0
  %1876 = vmatprep.subr.mxu0 0.0
  %1877 = vmatpush1.xpose.msra.mxu0 0.0
  %1878 = vmatprep.subr.mxu0 0.0
  %1879 = vmatpush1.xpose.msra.mxu0 0.0
  %1880 = vmatprep.subr.mxu0 0.0
  %1881 = vmatpush1.xpose.msra.mxu0 0.0
  %1882 = vmatprep.subr.mxu0 0.0
  %1883 = vmatpush1.xpose.msra.mxu0 0.0
  %1884 = vmatprep.subr.mxu0 0.0
  %1885 = vmatpush1.xpose.msra.mxu0 0.0
  %1886 = vmatprep.subr.mxu0 0.0
  %1887 = vmatpush1.xpose.msra.mxu0 0.0
  %1888 = vmatprep.subr.mxu0 0.0
  %1889 = vmatpush1.xpose.msra.mxu0 0.0
  %1890 = vmatprep.subr.mxu0 0.0
  %1891 = vmatpush1.xpose.msra.mxu0 0.0
  %1892 = vmatprep.subr.mxu0 0.0
  %1893 = vmatpush1.xpose.msra.mxu0 0.0
  %1894 = vmatprep.subr.mxu0 0.0
  %1895 = vmatpush1.xpose.msra.mxu0 0.0
  %1896 = vmatprep.subr.mxu0 0.0
  %1897 = vmatpush1.xpose.msra.mxu0 0.0
  %1898 = vmatprep.subr.mxu0 0.0
  %1899 = vmatpush1.xpose.msra.mxu0 0.0
  %1900 = vmatprep.subr.mxu0 0.0
  %1901 = vmatpush1.xpose.msra.mxu0 0.0
  %1902 = vmatprep.subr.mxu0 0.0
  %1903 = vmatpush1.xpose.msra.mxu0 0.0
  %1904 = vmatprep.subr.mxu0 0.0
  %1905 = vmatpush1.xpose.msra.mxu0 0.0
  %1906 = vmatprep.subr.mxu0 0.0
  %1907 = vmatpush1.xpose.msra.mxu0 0.0
  %1908 = vmatprep.subr.mxu0 0.0
  %1909 = vmatpush1.xpose.msra.mxu0 0.0
  %1910 = vmatprep.subr.mxu0 0.0
  %1911 = vmatpush1.xpose.msra.mxu0 0.0
  %1912 = vmatprep.subr.mxu0 0.0
  %1913 = vmatpush1.xpose.msra.mxu0 0.0
  %1914 = vmatprep.subr.mxu0 0.0
  %1915 = vmatpush1.xpose.msra.mxu0 0.0
  %1916 = vmatprep.subr.mxu0 0.0
  %1917 = vmatpush1.xpose.msra.mxu0 0.0
  %1918 = vmatprep.subr.mxu0 0.0
  %1919 = vmatpush1.xpose.msra.mxu0 0.0
  %1920 = vmatprep.subr.mxu0 0.0
  %1921 = vmatpush1.xpose.msra.mxu0 0.0
  %1922 = vmatprep.subr.mxu0 0.0
  %1923 = vmatpush1.xpose.msra.mxu0 0.0
  %1924 = vmatprep.subr.mxu0 0.0
  %1925 = vmatpush1.xpose.msra.mxu0 0.0
  %1926 = vmatprep.subr.mxu0 0.0
  %1927 = vmatpush1.xpose.msra.mxu0 0.0
  %1928 = vmatprep.subr.mxu0 0.0
  %1929 = vmatpush1.xpose.msra.mxu0 0.0
  %1930 = vmatprep.mubr.f32.mxu0 0.0
  %1931 = vmatmul.mubr.f32.gmra.mrb[0].mxu0 %v1861
  %v1932 = vpop.f32.mrb[0].mxu0
  %v1933 = vadd.f32 0.0, %v1932
  %v1934 = vpop.f32.mrb[0].mxu0
  %1935 = vdwg.mxu0
  %v1936 = vld [vmem:[%s3] sm:$0xff]
  %v1937 = vld [vmem:[%s3 + $0x8] sm:$0xff]
  %v1938 = vld [vmem:[%s3 + $0x10] sm:$0xff]
  %v1939 = vld [vmem:[%s3 + $0x18] sm:$0xff]
  %v1940 = vld [vmem:[%s4] sm:$0xff]
  %v1941 = vld [vmem:[%s4 + $0x8] sm:$0xff]
  %v1942 = vld [vmem:[%s4 + $0x10] sm:$0xff]
  %v1943 = vld [vmem:[%s4 + $0x18] sm:$0xff]
  %1945 = vset.pattern.permute.xlu0 0
  %1946 = vperm.xlu0 %1945, %v1940
  %v1947 = vpop.permute.xlu0 %1946
  %1950 = vset.pattern.permute.xlu0 0
  %1951 = vperm.xlu0 %1950, %v1941
  %v1952 = vpop.permute.xlu0 %1951
  %1955 = vset.pattern.permute.xlu0 0
  %1956 = vperm.xlu0 %1955, %v1942
  %v1957 = vpop.permute.xlu0 %1956
  %1960 = vset.pattern.permute.xlu0 0
  %1961 = vperm.xlu0 %1960, %v1943
  %v1962 = vpop.permute.xlu0 %1961
  %v1965 = vsel %vm112, %v1936, 0
  %v1968 = vsel %vm112, %v1937, 0
  %v1971 = vsel %vm112, %v1938, 0
  %v1974 = vsel %vm112, %v1939, 0
  %1976 = vmatprep.subr.mxu0 0.0
  %1977 = vmatpush1.msra.mxu0 %v1401
  %1978 = vmatprep.subr.mxu0 0.0
  %1979 = vmatpush1.msra.mxu0 %v1477
  %1980 = vmatprep.subr.mxu0 0.0
  %1981 = vmatpush1.msra.mxu0 %v1553
  %1982 = vmatprep.subr.mxu0 0.0
  %1983 = vmatpush1.msra.mxu0 %v1629
  %1984 = vmatprep.subr.mxu0 0.0
  %1985 = vmatpush1.msra.mxu0 0.0
  %1986 = vmatprep.subr.mxu0 0.0
  %1987 = vmatpush1.msra.mxu0 0.0
  %1988 = vmatprep.subr.mxu0 0.0
  %1989 = vmatpush1.msra.mxu0 0.0
  %1990 = vmatprep.subr.mxu0 0.0
  %1991 = vmatpush1.msra.mxu0 0.0
  %1992 = vmatprep.subr.mxu0 0.0
  %1993 = vmatpush1.msra.mxu0 0.0
  %1994 = vmatprep.subr.mxu0 0.0
  %1995 = vmatpush1.msra.mxu0 0.0
  %1996 = vmatprep.subr.mxu0 0.0
  %1997 = vmatpush1.msra.mxu0 0.0
  %1998 = vmatprep.subr.mxu0 0.0
  %1999 = vmatpush1.msra.mxu0 0.0
  %2000 = vmatprep.subr.mxu0 0.0
  %2001 = vmatpush1.msra.mxu0 0.0
  %2002 = vmatprep.subr.mxu0 0.0
  %2003 = vmatpush1.msra.mxu0 0.0
  %2004 = vmatprep.subr.mxu0 0.0
  %2005 = vmatpush1.msra.mxu0 0.0
  %2006 = vmatprep.subr.mxu0 0.0
  %2007 = vmatpush1.msra.mxu0 0.0
  %2008 = vmatprep.subr.mxu0 0.0
  %2009 = vmatpush1.msra.mxu0 0.0
  %2010 = vmatprep.subr.mxu0 0.0
  %2011 = vmatpush1.msra.mxu0 0.0
  %2012 = vmatprep.subr.mxu0 0.0
  %2013 = vmatpush1.msra.mxu0 0.0
  %2014 = vmatprep.subr.mxu0 0.0
  %2015 = vmatpush1.msra.mxu0 0.0
  %2016 = vmatprep.subr.mxu0 0.0
  %2017 = vmatpush1.msra.mxu0 0.0
  %2018 = vmatprep.subr.mxu0 0.0
  %2019 = vmatpush1.msra.mxu0 0.0
  %2020 = vmatprep.subr.mxu0 0.0
  %2021 = vmatpush1.msra.mxu0 0.0
  %2022 = vmatprep.subr.mxu0 0.0
  %2023 = vmatpush1.msra.mxu0 0.0
  %2024 = vmatprep.subr.mxu0 0.0
  %2025 = vmatpush1.msra.mxu0 0.0
  %2026 = vmatprep.subr.mxu0 0.0
  %2027 = vmatpush1.msra.mxu0 0.0
  %2028 = vmatprep.subr.mxu0 0.0
  %2029 = vmatpush1.msra.mxu0 0.0
  %2030 = vmatprep.subr.mxu0 0.0
  %2031 = vmatpush1.msra.mxu0 0.0
  %2032 = vmatprep.subr.mxu0 0.0
  %2033 = vmatpush1.msra.mxu0 0.0
  %2034 = vmatprep.subr.mxu0 0.0
  %2035 = vmatpush1.msra.mxu0 0.0
  %2036 = vmatprep.subr.mxu0 0.0
  %2037 = vmatpush1.msra.mxu0 0.0
  %2038 = vmatprep.subr.mxu0 0.0
  %2039 = vmatpush1.msra.mxu0 0.0
  %2040 = vmatprep.mubr.f32.mxu0 0.0
  %2041 = vmatmul.mubr.f32.gmra.mrb[0].mxu0 %v1965
  %v2042 = vpop.f32.mrb[0].mxu0
  %v2043 = vadd.f32 %v1947, %v2042
  %v2044 = vpop.f32.mrb[0].mxu0
  %2045 = vmatprep.mubr.f32.mxu0 0.0
  %2046 = vmatmul.mubr.f32.gmra.mrb[0].mxu0 %v1968
  %v2047 = vpop.f32.mrb[0].mxu0
  %v2048 = vadd.f32 %v1952, %v2047
  %v2049 = vpop.f32.mrb[0].mxu0
  %2050 = vmatprep.mubr.f32.mxu0 0.0
  %2051 = vmatmul.mubr.f32.gmra.mrb[0].mxu0 %v1971
  %v2052 = vpop.f32.mrb[0].mxu0
  %v2053 = vadd.f32 %v1957, %v2052
  %v2054 = vpop.f32.mrb[0].mxu0
  %2055 = vmatprep.mubr.f32.mxu0 0.0
  %2056 = vmatmul.mubr.f32.gmra.mrb[0].mxu0 %v1974
  %v2057 = vpop.f32.mrb[0].mxu0
  %v2058 = vadd.f32 %v1962, %v2057
  %v2059 = vpop.f32.mrb[0].mxu0
  %2060 = vdwg.mxu0
  %2061 = vmatprep.subr.mxu0 0.0
  %2062 = vmatpush1.msra.mxu0 %v1705
  %2063 = vmatprep.subr.mxu0 0.0
  %2064 = vmatpush1.msra.mxu0 %v1781
  %2065 = vmatprep.subr.mxu0 0.0
  %2066 = vmatpush1.msra.mxu0 %v1857
  %2067 = vmatprep.subr.mxu0 0.0
  %2068 = vmatpush1.msra.mxu0 %v1933
  %2069 = vmatprep.subr.mxu0 0.0
  %2070 = vmatpush1.msra.mxu0 0.0
  %2071 = vmatprep.subr.mxu0 0.0
  %2072 = vmatpush1.msra.mxu0 0.0
  %2073 = vmatprep.subr.mxu0 0.0
  %2074 = vmatpush1.msra.mxu0 0.0
  %2075 = vmatprep.subr.mxu0 0.0
  %2076 = vmatpush1.msra.mxu0 0.0
  %2077 = vmatprep.subr.mxu0 0.0
  %2078 = vmatpush1.msra.mxu0 0.0
  %2079 = vmatprep.subr.mxu0 0.0
  %2080 = vmatpush1.msra.mxu0 0.0
  %2081 = vmatprep.subr.mxu0 0.0
  %2082 = vmatpush1.msra.mxu0 0.0
  %2083 = vmatprep.subr.mxu0 0.0
  %2084 = vmatpush1.msra.mxu0 0.0
  %2085 = vmatprep.subr.mxu0 0.0
  %2086 = vmatpush1.msra.mxu0 0.0
  %2087 = vmatprep.subr.mxu0 0.0
  %2088 = vmatpush1.msra.mxu0 0.0
  %2089 = vmatprep.subr.mxu0 0.0
  %2090 = vmatpush1.msra.mxu0 0.0
  %2091 = vmatprep.subr.mxu0 0.0
  %2092 = vmatpush1.msra.mxu0 0.0
  %2093 = vmatprep.subr.mxu0 0.0
  %2094 = vmatpush1.msra.mxu0 0.0
  %2095 = vmatprep.subr.mxu0 0.0
  %2096 = vmatpush1.msra.mxu0 0.0
  %2097 = vmatprep.subr.mxu0 0.0
  %2098 = vmatpush1.msra.mxu0 0.0
  %2099 = vmatprep.subr.mxu0 0.0
  %2100 = vmatpush1.msra.mxu0 0.0
  %2101 = vmatprep.subr.mxu0 0.0
  %2102 = vmatpush1.msra.mxu0 0.0
  %2103 = vmatprep.subr.mxu0 0.0
  %2104 = vmatpush1.msra.mxu0 0.0
  %2105 = vmatprep.subr.mxu0 0.0
  %2106 = vmatpush1.msra.mxu0 0.0
  %2107 = vmatprep.subr.mxu0 0.0
  %2108 = vmatpush1.msra.mxu0 0.0
  %2109 = vmatprep.subr.mxu0 0.0
  %2110 = vmatpush1.msra.mxu0 0.0
  %2111 = vmatprep.subr.mxu0 0.0
  %2112 = vmatpush1.msra.mxu0 0.0
  %2113 = vmatprep.subr.mxu0 0.0
  %2114 = vmatpush1.msra.mxu0 0.0
  %2115 = vmatprep.subr.mxu0 0.0
  %2116 = vmatpush1.msra.mxu0 0.0
  %2117 = vmatprep.subr.mxu0 0.0
  %2118 = vmatpush1.msra.mxu0 0.0
  %2119 = vmatprep.subr.mxu0 0.0
  %2120 = vmatpush1.msra.mxu0 0.0
  %2121 = vmatprep.subr.mxu0 0.0
  %2122 = vmatpush1.msra.mxu0 0.0
  %2123 = vmatprep.subr.mxu0 0.0
  %2124 = vmatpush1.msra.mxu0 0.0
  %2125 = vmatprep.mubr.f32.mxu0 0.0
  %2126 = vmatmul.mubr.f32.gmra.mrb[0].mxu0 %v1965
  %v2127 = vpop.f32.mrb[0].mxu0
  %v2128 = vadd.f32 %v1947, %v2127
  %v2129 = vpop.f32.mrb[0].mxu0
  %2130 = vmatprep.mubr.f32.mxu0 0.0
  %2131 = vmatmul.mubr.f32.gmra.mrb[0].mxu0 %v1968
  %v2132 = vpop.f32.mrb[0].mxu0
  %v2133 = vadd.f32 %v1952, %v2132
  %v2134 = vpop.f32.mrb[0].mxu0
  %2135 = vmatprep.mubr.f32.mxu0 0.0
  %2136 = vmatmul.mubr.f32.gmra.mrb[0].mxu0 %v1971
  %v2137 = vpop.f32.mrb[0].mxu0
  %v2138 = vadd.f32 %v1957, %v2137
  %v2139 = vpop.f32.mrb[0].mxu0
  %2140 = vmatprep.mubr.f32.mxu0 0.0
  %2141 = vmatmul.mubr.f32.gmra.mrb[0].mxu0 %v1974
  %v2142 = vpop.f32.mrb[0].mxu0
  %v2143 = vadd.f32 %v1962, %v2142
  %v2144 = vpop.f32.mrb[0].mxu0
  %2145 = vdwg.mxu0
  %2146 = vst.msk [vmem:[%s5] sm:$0xff] %vm655, %v2043
  %2147 = vst.msk [vmem:[%s5 + $0x8] sm:$0xff] %vm655, %v2048
  %2148 = vst.msk [vmem:[%s5 + $0x10] sm:$0xff] %vm655, %v2053
  %2149 = vst.msk [vmem:[%s5 + $0x18] sm:$0xff] %vm655, %v2058
  %2150 = vst.msk [vmem:[%s5 + $0x20] sm:$0xff] %vm655, %v2128
  %2151 = vst.msk [vmem:[%s5 + $0x28] sm:$0xff] %vm655, %v2133
  %2152 = vst.msk [vmem:[%s5 + $0x30] sm:$0xff] %vm655, %v2138
  %2153 = vst.msk [vmem:[%s5 + $0x38] sm:$0xff] %vm655, %v2143
  // Predicated region
  $region22: #{attention_forward.1} parent=0 // pred_check
    _
  $region23: #{attention_forward.1} parent=0 // pred_check_branch
    %2155 = sbr.rel (0) target = $region25
  $region24: #{attention_forward.1} parent=0 // pred_region
    _
  $region25: #{attention_forward.1} parent=0 // pred_fallthru
    _
  // Predicated region
  $region26: #{attention_forward.1} parent=0 // pred_check
    _
  $region27: #{attention_forward.1} parent=0 // pred_check_branch
    %2157 = sbr.rel (0) target = $region29
  $region28: #{attention_forward.1} parent=0 // pred_region
    _
  $region29: #{attention_forward.1} parent=0 // pred_fallthru
    _

</llo_original>
